<compile_context>
chip_gen: v6e
topology: v6e:2x2x1
jax: 0.10.0
libtpu: 0.0.40
codegen_flags: <defaults>
</compile_context>

<pallas_src>
import functools

import jax
import jax.numpy as jnp
from jax import lax
from jax.experimental import pallas as pl
from jax.experimental.pallas import tpu as pltpu


# ----------------------------------------------------------------------------
# In-kernel helpers
# ----------------------------------------------------------------------------
def _shift_flat(x, off, hw):
    """y[:, p] = x[:, p + off] if 0 <= p + off < hw else 0 (off is a static int)."""
    if off == 0:
        return x
    c = x.shape[0]
    zeros = jnp.zeros((c, abs(off)), dtype=x.dtype)
    if off > 0:
        return jnp.concatenate([x[:, off:], zeros], axis=1)
    return jnp.concatenate([zeros, x[:, : hw + off]], axis=1)


def _conv3x3_same_flat(x_cf, w2d, col_masks, H, W):
    """3x3 'same' conv on channels-first flattened input.

    x_cf:      (Cin, H*W) f32
    w2d:       (Cout, 9*Cin) f32 with w2d[o, (dy*3+dx)*Cin + c] == w[dy, dx, c, o]
    col_masks: {0: mask, 2: mask} each (1, H*W) f32 column-validity masks
    returns:   (Cout, H*W) f32
    """
    hw = H * W
    pieces = []
    for dy in range(3):
        for dx in range(3):
            off = (dy - 1) * W + (dx - 1)
            shifted = _shift_flat(x_cf, off, hw)
            if dx != 1:                       # zero out columns that read across a row edge
                shifted = shifted * col_masks[dx]
            pieces.append(shifted)
    patches = jnp.concatenate(pieces, axis=0)                      # (9*Cin, H*W)  im2col
    return jnp.dot(w2d, patches, preferred_element_type=jnp.float32)  # single MXU matmul


# ----------------------------------------------------------------------------
# Fused DoubleConv kernel: conv3x3+BN+ReLU -> conv3x3+BN+ReLU, one image per step
# ----------------------------------------------------------------------------
def _double_conv_kernel(H, W, x_ref, w1_ref, b1_ref, w2_ref, b2_ref, o_ref):
    """x_ref: (1, Cin, H*W); w1_ref: (Cmid, 9*Cin); b1_ref: (Cmid, 1);
       w2_ref: (Cout, 9*Cmid); b2_ref: (Cout, 1); o_ref: (1, Cout, H*W)."""
    hw = H * W
    col = lax.broadcasted_iota(jnp.int32, (1, hw), 1) % W
    col_masks = {
        0: (col >= 1).astype(jnp.float32),          # reads column w-1
        2: (col <= W - 2).astype(jnp.float32),      # reads column w+1
    }

    x = x_ref[0].astype(jnp.float32)                                   # (Cin, HW)
    h = _conv3x3_same_flat(x, w1_ref[...], col_masks, H, W) + b1_ref[...]
    h = jnp.maximum(h, 0.0)                                            # (Cmid, HW) stays in VMEM
    y = _conv3x3_same_flat(h, w2_ref[...], col_masks, H, W) + b2_ref[...]
    y = jnp.maximum(y, 0.0)                                            # (Cout, HW)
    o_ref[0] = y.astype(o_ref.dtype)


def double_conv_fused(x_nchw, w1, b1, w2, b2):
    """x_nchw: (N, Cin, H, W); w1: (3,3,Cin,Cmid) (BN scale folded); b1: (Cmid,);
       w2: (3,3,Cmid,Cout); b2: (Cout,). Returns (N, Cout, H, W)."""
    N, Cin, H, W = x_nchw.shape
    Cmid = w1.shape[-1]
    Cout = w2.shape[-1]
    hw = H * W

    x_flat = x_nchw.reshape(N, Cin, hw).astype(jnp.float32)            # lane-dense last dim
    # (3,3,Cin,Co) -> (Co, 9*Cin) with layout matching the in-kernel im2col order.
    w1_2d = jnp.transpose(w1.reshape(9, Cin, Cmid), (2, 0, 1)).reshape(Cmid, 9 * Cin)
    w2_2d = jnp.transpose(w2.reshape(9, Cmid, Cout), (2, 0, 1)).reshape(Cout, 9 * Cmid)
    b1_2d = b1.reshape(Cmid, 1).astype(jnp.float32)
    b2_2d = b2.reshape(Cout, 1).astype(jnp.float32)

    kernel = functools.partial(_double_conv_kernel, H, W)
    out = pl.pallas_call(
        kernel,
        out_shape=jax.ShapeDtypeStruct((N, Cout, hw), x_nchw.dtype),
        grid_spec=pltpu.PrefetchScalarGridSpec(
            num_scalar_prefetch=0,
            grid=(N,),
            in_specs=[
                pl.BlockSpec((1, Cin, hw), lambda n: (n, 0, 0)),
                pl.BlockSpec((Cmid, 9 * Cin), lambda n: (0, 0)),
                pl.BlockSpec((Cmid, 1), lambda n: (0, 0)),
                pl.BlockSpec((Cout, 9 * Cmid), lambda n: (0, 0)),
                pl.BlockSpec((Cout, 1), lambda n: (0, 0)),
            ],
            out_specs=pl.BlockSpec((1, Cout, hw), lambda n: (n, 0, 0)),
        ),
        compiler_params=pltpu.CompilerParams(
            dimension_semantics=("parallel",),
        ),
    )(x_flat, w1_2d.astype(jnp.float32), b1_2d, w2_2d.astype(jnp.float32), b2_2d)
    return out.reshape(N, Cout, H, W)


# ----------------------------------------------------------------------------
# JAX glue: bilinear x2 upsample (align_corners=True), NCHW, matching nn.Upsample
# ----------------------------------------------------------------------------
def bilinear_upsample_x2_align_corners_nchw(x):
    N, C, H, W = x.shape
    H2, W2 = 2 * H, 2 * W
    ys = jnp.arange(H2, dtype=jnp.float32) * ((H - 1) / max(H2 - 1, 1))
    xs = jnp.arange(W2, dtype=jnp.float32) * ((W - 1) / max(W2 - 1, 1))
    y0 = jnp.clip(jnp.floor(ys).astype(jnp.int32), 0, max(H - 2, 0))
    x0 = jnp.clip(jnp.floor(xs).astype(jnp.int32), 0, max(W - 2, 0))
    y1 = jnp.minimum(y0 + 1, H - 1)
    x1i = jnp.minimum(x0 + 1, W - 1)
    wy = (ys - y0.astype(jnp.float32))[None, None, :, None]
    wx = (xs - x0.astype(jnp.float32))[None, None, None, :]
    top = x[:, :, y0, :]
    bot = x[:, :, y1, :]
    rows = top * (1.0 - wy) + bot * wy                   # (N, C, H2, W)
    left = rows[:, :, :, x0]
    right = rows[:, :, :, x1i]
    return left * (1.0 - wx) + right * wx                # (N, C, H2, W2)


# ----------------------------------------------------------------------------
# Up_2_skip forward (NCHW in / NCHW out, like the PyTorch module)
# ----------------------------------------------------------------------------
@jax.jit
def up_2_skip_forward(params, x1_nchw, x2_nchw):
    C2 = x2_nchw.shape[1]
    x1_up = bilinear_upsample_x2_align_corners_nchw(x1_nchw)      # (N, C1, H2, W2)
    x_cat = jnp.concatenate([x2_nchw, x1_up], axis=1)             # single skip copy only

    # Fold the duplicated skip (cat([x2, x2, x1])) into the conv1 weights (exact).
    w1 = params["w1"]                                             # (3,3,2*C2+C1,Cmid)
    w1_folded = jnp.concatenate(
        [w1[:, :, :C2, :] + w1[:, :, C2:2 * C2, :], w1[:, :, 2 * C2:, :]], axis=2)
    # Fold the BN scale into the conv weights; biases already hold the folded BN bias.
    w1_eff = w1_folded * params["scale1"][None, None, None, :]
    w2_eff = params["w2"] * params["scale2"][None, None, None, :]

    return double_conv_fused(x_cat, w1_eff, params["bias1"], w2_eff, params["bias2"])


# ----------------------------------------------------------------------------
# Pure-JAX reference (unfolded weights, explicit double concat) for validation
# ----------------------------------------------------------------------------
def _reference_forward(params, x1_nchw, x2_nchw):
    x1_up = bilinear_upsample_x2_align_corners_nchw(x1_nchw)
    x = jnp.concatenate([x2_nchw, x2_nchw, x1_up], axis=1)

    def conv_bn_relu(x, w, scale, bias):
        y = lax.conv_general_dilated(
            x, w, window_strides=(1, 1), padding=((1, 1), (1, 1)),
            dimension_numbers=("NCHW", "HWIO", "NCHW"))
        y = y * scale[None, :, None, None] + bias[None, :, None, None]
        return jnp.maximum(y, 0.0)

    h = conv_bn_relu(x, params["w1"], params["scale1"], params["bias1"])
    return conv_bn_relu(h, params["w2"], params["scale2"], params["bias2"])


# ----------------------------------------------------------------------------
# Deterministic parameter construction (DoubleConv with res_block=False; the
# BasicBlock `residual` branch is never executed). BN in eval mode (fresh stats).
# ----------------------------------------------------------------------------
def init_params(key, in_ch, mid_ch, out_ch, eps=1e-5):
    k0, k1, k2, k3 = jax.random.split(key, 4)
    w1 = jax.random.normal(k0, (3, 3, in_ch, mid_ch), jnp.float32) * 0.1
    b1 = jax.random.normal(k1, (mid_ch,), jnp.float32) * 0.1
    w2 = jax.random.normal(k2, (3, 3, mid_ch, out_ch), jnp.float32) * 0.1
    b2 = jax.random.normal(k3, (out_ch,), jnp.float32) * 0.1

    def fold_bn(conv_bias, c):
        gamma = jnp.ones((c,), jnp.float32)
        beta = jnp.zeros((c,), jnp.float32)
        mean = jnp.zeros((c,), jnp.float32)
        var = jnp.ones((c,), jnp.float32)
        scale = gamma / jnp.sqrt(var + eps)
        bias = (conv_bias - mean) * scale + beta
        return scale, bias

    scale1, bias1 = fold_bn(b1, mid_ch)
    scale2, bias2 = fold_bn(b2, out_ch)
    return {"w1": w1, "scale1": scale1, "bias1": bias1,
            "w2": w2, "scale2": scale2, "bias2": bias2}


if __name__ == "__main__":
    key = jax.random.PRNGKey(0)
    kp, kx1, kx2 = jax.random.split(key, 3)

    # x1: (N, C1, H, W) low-res features, x2: (N, C2, 2H, 2W) skip features.
    # in_channels = 2*C2 + C1 = 12, mid = in_channels // 3 = 4, out_channels = 8.
    N, C1, C2, H, W = 2, 4, 4, 16, 16
    in_channels = 2 * C2 + C1        # 12
    out_channels = 8
    mid_channels = in_channels // 3  # 4

    params = init_params(kp, in_channels, mid_channels, out_channels)

    x1 = jax.random.normal(kx1, (N, C1, H, W), jnp.float32)
    x2 = jax.random.normal(kx2, (N, C2, 2 * H, 2 * W), jnp.float32)

    out = up_2_skip_forward(params, x1, x2)
    out = jax.block_until_ready(out)
    assert out.shape == (N, out_channels, 2 * H, 2 * W), out.shape
    assert bool(jnp.all(jnp.isfinite(out)))

    # Validate the fused kernel + weight folding against a plain XLA reference.
    ref = jax.block_until_ready(_reference_forward(params, x1, x2))
    assert bool(jnp.allclose(out, ref, atol=1e-2, rtol=1e-2)), \
        float(jnp.max(jnp.abs(out - ref)))

    print("KERNEL_OK")
</pallas_src>

<mosaic_0001>
module attributes {stable_mosaic.version = 11 : i64} {
  func.func @_double_conv_kernel(%arg0: i32, %arg1: memref<1x8x1024xf32, #tpu.memory_space<vmem>>, %arg2: memref<4x72xf32, #tpu.memory_space<vmem>>, %arg3: memref<4x1xf32, #tpu.memory_space<vmem>>, %arg4: memref<8x36xf32, #tpu.memory_space<vmem>>, %arg5: memref<8x1xf32, #tpu.memory_space<vmem>>, %arg6: memref<1x8x1024xf32, #tpu.memory_space<vmem>>) attributes {dimension_semantics = [#tpu.dimension_semantics<parallel>], iteration_bounds = array<i64: 2>, scalar_prefetch = 0 : i64, scratch_operands = 0 : i64, tpu.core_type = #tpu.core_type<tc>, window_params = [{transform_indices = @transform_0, window_bounds = array<i64: 1, 8, 1024>}, {pipeline_mode = #tpu.pipeline_mode<synchronous>, transform_indices = @transform_1, window_bounds = array<i64: 4, 72>}, {pipeline_mode = #tpu.pipeline_mode<synchronous>, transform_indices = @transform_2, window_bounds = array<i64: 4, 1>}, {pipeline_mode = #tpu.pipeline_mode<synchronous>, transform_indices = @transform_3, window_bounds = array<i64: 8, 36>}, {pipeline_mode = #tpu.pipeline_mode<synchronous>, transform_indices = @transform_4, window_bounds = array<i64: 8, 1>}, {transform_indices = @transform_5, window_bounds = array<i64: 1, 8, 1024>}]} {
    %0 = tpu.iota {dimensions = array<i32: 1>} : vector<1x1024xi32>
    %c32_i32 = arith.constant 32 : i32
    %c0_i32 = arith.constant 0 : i32
    %1 = arith.cmpi eq, %c32_i32, %c0_i32 : i32
    %c1_i32 = arith.constant 1 : i32
    %2 = arith.select %1, %c1_i32, %c32_i32 : i32
    %3 = vector.broadcast %2 : i32 to vector<1x1024xi32>
    %4 = arith.remsi %0, %3 : vector<1x1024xi32>
    %c0_i32_0 = arith.constant 0 : i32
    %5 = vector.broadcast %c0_i32_0 : i32 to vector<1x1024xi32>
    %6 = arith.cmpi ne, %4, %5 : vector<1x1024xi32>
    %c0_i32_1 = arith.constant 0 : i32
    %7 = vector.broadcast %c0_i32_1 : i32 to vector<1x1024xi32>
    %8 = arith.cmpi slt, %4, %7 : vector<1x1024xi32>
    %c0_i32_2 = arith.constant 0 : i32
    %9 = arith.cmpi slt, %2, %c0_i32_2 : i32
    %10 = vector.broadcast %9 : i1 to vector<1x1024xi1>
    %11 = vector.broadcast %10 : vector<1x1024xi1> to vector<1x1024xi1>
    %12 = arith.xori %8, %11 : vector<1x1024xi1>
    %13 = arith.andi %12, %6 : vector<1x1024xi1>
    %14 = vector.broadcast %2 : i32 to vector<1x1024xi32>
    %15 = arith.addi %4, %14 : vector<1x1024xi32>
    %16 = arith.select %13, %15, %4 : vector<1x1024xi1>, vector<1x1024xi32>
    %c1_i32_3 = arith.constant 1 : i32
    %17 = vector.broadcast %c1_i32_3 : i32 to vector<1x1024xi32>
    %18 = arith.cmpi sge, %16, %17 : vector<1x1024xi32>
    %19 = arith.extui %18 : vector<1x1024xi1> to vector<1x1024xi32>
    %20 = arith.sitofp %19 : vector<1x1024xi32> to vector<1x1024xf32>
    %c30_i32 = arith.constant 30 : i32
    %21 = vector.broadcast %c30_i32 : i32 to vector<1x1024xi32>
    %22 = arith.cmpi sle, %16, %21 : vector<1x1024xi32>
    %23 = arith.extui %22 : vector<1x1024xi1> to vector<1x1024xi32>
    %24 = arith.sitofp %23 : vector<1x1024xi32> to vector<1x1024xf32>
    %c0 = arith.constant 0 : index
    %c0_4 = arith.constant 0 : index
    %c0_5 = arith.constant 0 : index
    %25 = vector.load %arg1[%c0, %c0_4, %c0_5] : memref<1x8x1024xf32, #tpu.memory_space<vmem>>, vector<1x8x1024xf32>
    %26 = vector.shape_cast %25 : vector<1x8x1024xf32> to vector<8x1024xf32>
    %c0_6 = arith.constant 0 : index
    %c0_7 = arith.constant 0 : index
    %27 = vector.load %arg2[%c0_6, %c0_7] : memref<4x72xf32, #tpu.memory_space<vmem>>, vector<4x72xf32>
    %cst = arith.constant 0.000000e+00 : f32
    %28 = vector.broadcast %cst : f32 to vector<8x33xf32>
    %29 = vector.extract_strided_slice %26 {offsets = [0, 0], sizes = [8, 991], strides = [1, 1]} : vector<8x1024xf32> to vector<8x991xf32>
    %30 = tpu.concatenate %28, %29 in 1 : vector<8x33xf32>, vector<8x991xf32> -> vector<8x1024xf32>
    %31 = vector.broadcast %20 : vector<1x1024xf32> to vector<8x1024xf32>
    %32 = arith.mulf %30, %31 : vector<8x1024xf32>
    %cst_8 = arith.constant 0.000000e+00 : f32
    %33 = vector.broadcast %cst_8 : f32 to vector<8x32xf32>
    %34 = vector.extract_strided_slice %26 {offsets = [0, 0], sizes = [8, 992], strides = [1, 1]} : vector<8x1024xf32> to vector<8x992xf32>
    %35 = tpu.concatenate %33, %34 in 1 : vector<8x32xf32>, vector<8x992xf32> -> vector<8x1024xf32>
    %cst_9 = arith.constant 0.000000e+00 : f32
    %36 = vector.broadcast %cst_9 : f32 to vector<8x31xf32>
    %37 = vector.extract_strided_slice %26 {offsets = [0, 0], sizes = [8, 993], strides = [1, 1]} : vector<8x1024xf32> to vector<8x993xf32>
    %38 = tpu.concatenate %36, %37 in 1 : vector<8x31xf32>, vector<8x993xf32> -> vector<8x1024xf32>
    %39 = vector.broadcast %24 : vector<1x1024xf32> to vector<8x1024xf32>
    %40 = arith.mulf %38, %39 : vector<8x1024xf32>
    %cst_10 = arith.constant 0.000000e+00 : f32
    %41 = vector.broadcast %cst_10 : f32 to vector<8x1xf32>
    %42 = vector.extract_strided_slice %26 {offsets = [0, 0], sizes = [8, 1023], strides = [1, 1]} : vector<8x1024xf32> to vector<8x1023xf32>
    %43 = tpu.concatenate %41, %42 in 1 : vector<8x1xf32>, vector<8x1023xf32> -> vector<8x1024xf32>
    %44 = vector.broadcast %20 : vector<1x1024xf32> to vector<8x1024xf32>
    %45 = arith.mulf %43, %44 : vector<8x1024xf32>
    %cst_11 = arith.constant 0.000000e+00 : f32
    %46 = vector.broadcast %cst_11 : f32 to vector<8x1xf32>
    %47 = vector.extract_strided_slice %26 {offsets = [0, 1], sizes = [8, 1023], strides = [1, 1]} : vector<8x1024xf32> to vector<8x1023xf32>
    %48 = tpu.concatenate %47, %46 in 1 : vector<8x1023xf32>, vector<8x1xf32> -> vector<8x1024xf32>
    %49 = vector.broadcast %24 : vector<1x1024xf32> to vector<8x1024xf32>
    %50 = arith.mulf %48, %49 : vector<8x1024xf32>
    %cst_12 = arith.constant 0.000000e+00 : f32
    %51 = vector.broadcast %cst_12 : f32 to vector<8x31xf32>
    %52 = vector.extract_strided_slice %26 {offsets = [0, 31], sizes = [8, 993], strides = [1, 1]} : vector<8x1024xf32> to vector<8x993xf32>
    %53 = tpu.concatenate %52, %51 in 1 : vector<8x993xf32>, vector<8x31xf32> -> vector<8x1024xf32>
    %54 = vector.broadcast %20 : vector<1x1024xf32> to vector<8x1024xf32>
    %55 = arith.mulf %53, %54 : vector<8x1024xf32>
    %cst_13 = arith.constant 0.000000e+00 : f32
    %56 = vector.broadcast %cst_13 : f32 to vector<8x32xf32>
    %57 = vector.extract_strided_slice %26 {offsets = [0, 32], sizes = [8, 992], strides = [1, 1]} : vector<8x1024xf32> to vector<8x992xf32>
    %58 = tpu.concatenate %57, %56 in 1 : vector<8x992xf32>, vector<8x32xf32> -> vector<8x1024xf32>
    %cst_14 = arith.constant 0.000000e+00 : f32
    %59 = vector.broadcast %cst_14 : f32 to vector<8x33xf32>
    %60 = vector.extract_strided_slice %26 {offsets = [0, 33], sizes = [8, 991], strides = [1, 1]} : vector<8x1024xf32> to vector<8x991xf32>
    %61 = tpu.concatenate %60, %59 in 1 : vector<8x991xf32>, vector<8x33xf32> -> vector<8x1024xf32>
    %62 = vector.broadcast %24 : vector<1x1024xf32> to vector<8x1024xf32>
    %63 = arith.mulf %61, %62 : vector<8x1024xf32>
    %64 = tpu.concatenate %32, %35, %40, %45, %26, %50, %55, %58, %63 in 0 : vector<8x1024xf32>, vector<8x1024xf32>, vector<8x1024xf32>, vector<8x1024xf32>, vector<8x1024xf32>, vector<8x1024xf32>, vector<8x1024xf32>, vector<8x1024xf32>, vector<8x1024xf32> -> vector<72x1024xf32>
    %cst_15 = arith.constant dense<0.000000e+00> : vector<4x1024xf32>
    %65 = tpu.matmul %27, %64, %cst_15 {dimension_numbers = #tpu.dot_dimension_numbers<[1], [0], [0], [1], [0, 0, 1, 1], [], []>} : vector<4x72xf32>, vector<72x1024xf32>, vector<4x1024xf32> -> vector<4x1024xf32>
    %c0_16 = arith.constant 0 : index
    %c0_17 = arith.constant 0 : index
    %66 = vector.load %arg3[%c0_16, %c0_17] : memref<4x1xf32, #tpu.memory_space<vmem>>, vector<4x1xf32>
    %67 = vector.broadcast %66 : vector<4x1xf32> to vector<4x1024xf32>
    %68 = arith.addf %65, %67 : vector<4x1024xf32>
    %cst_18 = arith.constant 0.000000e+00 : f32
    %69 = vector.broadcast %cst_18 : f32 to vector<4x1024xf32>
    %70 = arith.maximumf %68, %69 : vector<4x1024xf32>
    %c0_19 = arith.constant 0 : index
    %c0_20 = arith.constant 0 : index
    %71 = vector.load %arg4[%c0_19, %c0_20] : memref<8x36xf32, #tpu.memory_space<vmem>>, vector<8x36xf32>
    %cst_21 = arith.constant 0.000000e+00 : f32
    %72 = vector.broadcast %cst_21 : f32 to vector<4x33xf32>
    %73 = vector.extract_strided_slice %70 {offsets = [0, 0], sizes = [4, 991], strides = [1, 1]} : vector<4x1024xf32> to vector<4x991xf32>
    %74 = tpu.concatenate %72, %73 in 1 : vector<4x33xf32>, vector<4x991xf32> -> vector<4x1024xf32>
    %75 = vector.broadcast %20 : vector<1x1024xf32> to vector<4x1024xf32>
    %76 = arith.mulf %74, %75 : vector<4x1024xf32>
    %cst_22 = arith.constant 0.000000e+00 : f32
    %77 = vector.broadcast %cst_22 : f32 to vector<4x32xf32>
    %78 = vector.extract_strided_slice %70 {offsets = [0, 0], sizes = [4, 992], strides = [1, 1]} : vector<4x1024xf32> to vector<4x992xf32>
    %79 = tpu.concatenate %77, %78 in 1 : vector<4x32xf32>, vector<4x992xf32> -> vector<4x1024xf32>
    %cst_23 = arith.constant 0.000000e+00 : f32
    %80 = vector.broadcast %cst_23 : f32 to vector<4x31xf32>
    %81 = vector.extract_strided_slice %70 {offsets = [0, 0], sizes = [4, 993], strides = [1, 1]} : vector<4x1024xf32> to vector<4x993xf32>
    %82 = tpu.concatenate %80, %81 in 1 : vector<4x31xf32>, vector<4x993xf32> -> vector<4x1024xf32>
    %83 = vector.broadcast %24 : vector<1x1024xf32> to vector<4x1024xf32>
    %84 = arith.mulf %82, %83 : vector<4x1024xf32>
    %cst_24 = arith.constant 0.000000e+00 : f32
    %85 = vector.broadcast %cst_24 : f32 to vector<4x1xf32>
    %86 = vector.extract_strided_slice %70 {offsets = [0, 0], sizes = [4, 1023], strides = [1, 1]} : vector<4x1024xf32> to vector<4x1023xf32>
    %87 = tpu.concatenate %85, %86 in 1 : vector<4x1xf32>, vector<4x1023xf32> -> vector<4x1024xf32>
    %88 = vector.broadcast %20 : vector<1x1024xf32> to vector<4x1024xf32>
    %89 = arith.mulf %87, %88 : vector<4x1024xf32>
    %cst_25 = arith.constant 0.000000e+00 : f32
    %90 = vector.broadcast %cst_25 : f32 to vector<4x1xf32>
    %91 = vector.extract_strided_slice %70 {offsets = [0, 1], sizes = [4, 1023], strides = [1, 1]} : vector<4x1024xf32> to vector<4x1023xf32>
    %92 = tpu.concatenate %91, %90 in 1 : vector<4x1023xf32>, vector<4x1xf32> -> vector<4x1024xf32>
    %93 = vector.broadcast %24 : vector<1x1024xf32> to vector<4x1024xf32>
    %94 = arith.mulf %92, %93 : vector<4x1024xf32>
    %cst_26 = arith.constant 0.000000e+00 : f32
    %95 = vector.broadcast %cst_26 : f32 to vector<4x31xf32>
    %96 = vector.extract_strided_slice %70 {offsets = [0, 31], sizes = [4, 993], strides = [1, 1]} : vector<4x1024xf32> to vector<4x993xf32>
    %97 = tpu.concatenate %96, %95 in 1 : vector<4x993xf32>, vector<4x31xf32> -> vector<4x1024xf32>
    %98 = vector.broadcast %20 : vector<1x1024xf32> to vector<4x1024xf32>
    %99 = arith.mulf %97, %98 : vector<4x1024xf32>
    %cst_27 = arith.constant 0.000000e+00 : f32
    %100 = vector.broadcast %cst_27 : f32 to vector<4x32xf32>
    %101 = vector.extract_strided_slice %70 {offsets = [0, 32], sizes = [4, 992], strides = [1, 1]} : vector<4x1024xf32> to vector<4x992xf32>
    %102 = tpu.concatenate %101, %100 in 1 : vector<4x992xf32>, vector<4x32xf32> -> vector<4x1024xf32>
    %cst_28 = arith.constant 0.000000e+00 : f32
    %103 = vector.broadcast %cst_28 : f32 to vector<4x33xf32>
    %104 = vector.extract_strided_slice %70 {offsets = [0, 33], sizes = [4, 991], strides = [1, 1]} : vector<4x1024xf32> to vector<4x991xf32>
    %105 = tpu.concatenate %104, %103 in 1 : vector<4x991xf32>, vector<4x33xf32> -> vector<4x1024xf32>
    %106 = vector.broadcast %24 : vector<1x1024xf32> to vector<4x1024xf32>
    %107 = arith.mulf %105, %106 : vector<4x1024xf32>
    %108 = tpu.concatenate %76, %79, %84, %89, %70, %94, %99, %102, %107 in 0 : vector<4x1024xf32>, vector<4x1024xf32>, vector<4x1024xf32>, vector<4x1024xf32>, vector<4x1024xf32>, vector<4x1024xf32>, vector<4x1024xf32>, vector<4x1024xf32>, vector<4x1024xf32> -> vector<36x1024xf32>
    %cst_29 = arith.constant dense<0.000000e+00> : vector<8x1024xf32>
    %109 = tpu.matmul %71, %108, %cst_29 {dimension_numbers = #tpu.dot_dimension_numbers<[1], [0], [0], [1], [0, 0, 1, 1], [], []>} : vector<8x36xf32>, vector<36x1024xf32>, vector<8x1024xf32> -> vector<8x1024xf32>
    %c0_30 = arith.constant 0 : index
    %c0_31 = arith.constant 0 : index
    %110 = vector.load %arg5[%c0_30, %c0_31] : memref<8x1xf32, #tpu.memory_space<vmem>>, vector<8x1xf32>
    %111 = vector.broadcast %110 : vector<8x1xf32> to vector<8x1024xf32>
    %112 = arith.addf %109, %111 : vector<8x1024xf32>
    %cst_32 = arith.constant 0.000000e+00 : f32
    %113 = vector.broadcast %cst_32 : f32 to vector<8x1024xf32>
    %114 = arith.maximumf %112, %113 : vector<8x1024xf32>
    %c0_33 = arith.constant 0 : index
    %c0_34 = arith.constant 0 : index
    %c0_35 = arith.constant 0 : index
    %115 = vector.load %arg6[%c0_33, %c0_34, %c0_35] : memref<1x8x1024xf32, #tpu.memory_space<vmem>>, vector<1x8x1024xf32>
    %116 = vector.shape_cast %115 : vector<1x8x1024xf32> to vector<8x1024xf32>
    %117 = vector.shape_cast %114 : vector<8x1024xf32> to vector<1x8x1024xf32>
    tpu.vector_store %arg6[%c0_33, %c0_34, %c0_35], %117 {strides = array<i32>} : memref<1x8x1024xf32, #tpu.memory_space<vmem>>, vector<1x8x1024xf32>,
    return
  }
  func.func @transform_0(%arg0: i32) -> (i32, i32, i32) {
    %c0_i32 = arith.constant 0 : i32
    %c0_i32_0 = arith.constant 0 : i32
    %c0_i32_1 = arith.constant 0 : i32
    return %arg0, %c0_i32, %c0_i32_0 : i32, i32, i32
  }
  func.func @transform_1(%arg0: i32) -> (i32, i32) {
    %c0_i32 = arith.constant 0 : i32
    %c0_i32_0 = arith.constant 0 : i32
    %c0_i32_1 = arith.constant 0 : i32
    return %c0_i32, %c0_i32_0 : i32, i32
  }
  func.func @transform_2(%arg0: i32) -> (i32, i32) {
    %c0_i32 = arith.constant 0 : i32
    %c0_i32_0 = arith.constant 0 : i32
    %c0_i32_1 = arith.constant 0 : i32
    return %c0_i32, %c0_i32_0 : i32, i32
  }
  func.func @transform_3(%arg0: i32) -> (i32, i32) {
    %c0_i32 = arith.constant 0 : i32
    %c0_i32_0 = arith.constant 0 : i32
    %c0_i32_1 = arith.constant 0 : i32
    return %c0_i32, %c0_i32_0 : i32, i32
  }
  func.func @transform_4(%arg0: i32) -> (i32, i32) {
    %c0_i32 = arith.constant 0 : i32
    %c0_i32_0 = arith.constant 0 : i32
    %c0_i32_1 = arith.constant 0 : i32
    return %c0_i32, %c0_i32_0 : i32, i32
  }
  func.func @transform_5(%arg0: i32) -> (i32, i32, i32) {
    %c0_i32 = arith.constant 0 : i32
    %c0_i32_0 = arith.constant 0 : i32
    %c0_i32_1 = arith.constant 0 : i32
    return %arg0, %c0_i32, %c0_i32_0 : i32, i32, i32
  }
}

</mosaic_0001>

<llo_original>
// kernel: up_2_skip_forward.1
$region0: #{up_2_skip_forward.1}
  #allocation0 [shape = 'u32[]', space=smem, size = 0x4, offset = 0x4, fixed_abs, tag = 'smem constant byte address 0x4 - core index']
  #allocation1 [shape = 'u32[144,128]{1,0:T(1,128)}', space=vmem, size = 0x12000, scoped, tag = 'internal scratch']
  %s0 = inlined_call_operand.vmem [shape: f32[2,8,1024], index: 0, kind: input, shape index: {}]
  %s1 = inlined_call_operand.vmem [shape: f32[4,72], index: 1, kind: input, shape index: {}]
  %s2 = inlined_call_operand.vmem [shape: f32[4,1], index: 2, kind: input, shape index: {}]
  %s3 = inlined_call_operand.vmem [shape: f32[8,36], index: 3, kind: input, shape index: {}]
  %s4 = inlined_call_operand.vmem [shape: f32[8,1], index: 4, kind: input, shape index: {}]
  %s5 = inlined_call_operand.vmem [shape: f32[2,8,1024], index: 5, kind: output, shape index: {}]
  %s6 = sld [smem:[#allocation0]]
  $region53: #{up_2_skip_forward.1} parent=0
    _
  %s8 = ssub.s32 1, %s6
  %s9 = scalar_select 0, %s8, %s6
  loop: start=0, step=1, limit=4
  $region2: #{up_2_skip_forward.1} parent=0 // loop_pre_header
    _
  $region3: #{up_2_skip_forward.1} parent=0 // loop_header
    %s11 = sphi 0, %s15
    %p12 = scmp.ge.s32.totalorder %s11, 4
    %s21 = sphi 0, %s23
    %s24 = sphi 0, %s21
    %s25 = sphi 0, %s24
    %s41 = sphi 0, %s25
    %s45 = sphi 0, %s45
    %s47 = sphi 0, %s45
    %s48 = sphi 0, %s47
    %s62 = sphi 0, %s48
    %s66 = sphi 0, %s66
    %s68 = sphi 0, %s66
    %s69 = sphi 0, %s68
    %s83 = sphi 0, %s69
    %s87 = sphi 0, %s87
    %s89 = sphi 0, %s87
    %s90 = sphi 0, %s89
    %s104 = sphi 0, %s90
    %s108 = sphi 0, %s108
    %s110 = sphi 0, %s108
    %s111 = sphi 0, %s110
    %s125 = sphi 0, %s111
    %s131 = sphi 0, %s133
    %s134 = sphi 0, %s131
    %s135 = sphi 0, %s134
    %s151 = sphi 0, %s135
  $region4: #{up_2_skip_forward.1} parent=0 // loop_header_branch
    %14 = sbr.rel (%p12) target = $region8
  $region5: #{up_2_skip_forward.1} parent=0 // loop_body
    %s16 = ssub.s32 %s11, 1
    %s17 = ssub.s32 %s11, 2
    %s18 = sadd.s32 %s11, 1
    %s19 = ssub.s32 %s11, %s18
    %p20 = scmp.eq.s32.totalorder %s19, 0
    %s22 = sadd.s32 %s21, 1
    %s23 = scalar_select %p20, %s21, %s22
    %p26 = pneg %p20
    %p27 = scmp.eq.s32.totalorder %s11, 1
    %p28 = por %p26, %p27
    %p29 = scmp.ne.s32.totalorder %s21, %s24
    %p30 = scmp.eq.s32.totalorder %s11, 0
    %p31 = por %p29, %p30
    %p32 = scmp.ne.s32.totalorder %s21, %s24
    %p33 = scmp.eq.s32.totalorder %s16, 1
    %p34 = por %p32, %p33
    %p35 = scmp.ne.s32.totalorder %s24, %s25
    %p36 = scmp.eq.s32.totalorder %s16, 0
    %p37 = por %p35, %p36
    %p38 = scmp.ne.s32.totalorder %s24, %s25
    %p39 = scmp.eq.s32.totalorder %s17, 1
    %p40 = por %p38, %p39
    %p42 = scmp.ne.s32.totalorder %s25, %s41
    %p43 = scmp.eq.s32.totalorder %s17, 0
    %p44 = por %p42, %p43
    %s46 = sadd.s32 %s45, 1
    %p49 = scmp.eq.s32.totalorder %s11, 1
    %p50 = scmp.ne.s32.totalorder %s45, %s47
    %p51 = scmp.eq.s32.totalorder %s11, 0
    %p52 = por %p50, %p51
    %p53 = scmp.ne.s32.totalorder %s45, %s47
    %p54 = scmp.eq.s32.totalorder %s16, 1
    %p55 = por %p53, %p54
    %p56 = scmp.ne.s32.totalorder %s47, %s48
    %p57 = scmp.eq.s32.totalorder %s16, 0
    %p58 = por %p56, %p57
    %p59 = scmp.ne.s32.totalorder %s47, %s48
    %p60 = scmp.eq.s32.totalorder %s17, 1
    %p61 = por %p59, %p60
    %p63 = scmp.ne.s32.totalorder %s48, %s62
    %p64 = scmp.eq.s32.totalorder %s17, 0
    %p65 = por %p63, %p64
    %s67 = sadd.s32 %s66, 1
    %p70 = scmp.eq.s32.totalorder %s11, 1
    %p71 = scmp.ne.s32.totalorder %s66, %s68
    %p72 = scmp.eq.s32.totalorder %s11, 0
    %p73 = por %p71, %p72
    %p74 = scmp.ne.s32.totalorder %s66, %s68
    %p75 = scmp.eq.s32.totalorder %s16, 1
    %p76 = por %p74, %p75
    %p77 = scmp.ne.s32.totalorder %s68, %s69
    %p78 = scmp.eq.s32.totalorder %s16, 0
    %p79 = por %p77, %p78
    %p80 = scmp.ne.s32.totalorder %s68, %s69
    %p81 = scmp.eq.s32.totalorder %s17, 1
    %p82 = por %p80, %p81
    %p84 = scmp.ne.s32.totalorder %s69, %s83
    %p85 = scmp.eq.s32.totalorder %s17, 0
    %p86 = por %p84, %p85
    %s88 = sadd.s32 %s87, 1
    %p91 = scmp.eq.s32.totalorder %s11, 1
    %p92 = scmp.ne.s32.totalorder %s87, %s89
    %p93 = scmp.eq.s32.totalorder %s11, 0
    %p94 = por %p92, %p93
    %p95 = scmp.ne.s32.totalorder %s87, %s89
    %p96 = scmp.eq.s32.totalorder %s16, 1
    %p97 = por %p95, %p96
    %p98 = scmp.ne.s32.totalorder %s89, %s90
    %p99 = scmp.eq.s32.totalorder %s16, 0
    %p100 = por %p98, %p99
    %p101 = scmp.ne.s32.totalorder %s89, %s90
    %p102 = scmp.eq.s32.totalorder %s17, 1
    %p103 = por %p101, %p102
    %p105 = scmp.ne.s32.totalorder %s90, %s104
    %p106 = scmp.eq.s32.totalorder %s17, 0
    %p107 = por %p105, %p106
    %s109 = sadd.s32 %s108, 1
    %p112 = scmp.eq.s32.totalorder %s11, 1
    %p113 = scmp.ne.s32.totalorder %s108, %s110
    %p114 = scmp.eq.s32.totalorder %s11, 0
    %p115 = por %p113, %p114
    %p116 = scmp.ne.s32.totalorder %s108, %s110
    %p117 = scmp.eq.s32.totalorder %s16, 1
    %p118 = por %p116, %p117
    %p119 = scmp.ne.s32.totalorder %s110, %s111
    %p120 = scmp.eq.s32.totalorder %s16, 0
    %p121 = por %p119, %p120
    %p122 = scmp.ne.s32.totalorder %s110, %s111
    %p123 = scmp.eq.s32.totalorder %s17, 1
    %p124 = por %p122, %p123
    %p126 = scmp.ne.s32.totalorder %s111, %s125
    %p127 = scmp.eq.s32.totalorder %s17, 0
    %p128 = por %p126, %p127
    %s129 = ssub.s32 %s11, %s18
    %p130 = scmp.eq.s32.totalorder %s129, 0
    %s132 = sadd.s32 %s131, 1
    %s133 = scalar_select %p130, %s131, %s132
    %p136 = pneg %p130
    %p137 = scmp.eq.s32.totalorder %s11, 1
    %p138 = por %p136, %p137
    %p139 = scmp.ne.s32.totalorder %s131, %s134
    %p140 = scmp.eq.s32.totalorder %s11, 0
    %p141 = por %p139, %p140
    %p142 = scmp.ne.s32.totalorder %s131, %s134
    %p143 = scmp.eq.s32.totalorder %s16, 1
    %p144 = por %p142, %p143
    %p145 = scmp.ne.s32.totalorder %s134, %s135
    %p146 = scmp.eq.s32.totalorder %s16, 0
    %p147 = por %p145, %p146
    %p148 = scmp.ne.s32.totalorder %s134, %s135
    %p149 = scmp.eq.s32.totalorder %s17, 1
    %p150 = por %p148, %p149
    %p152 = scmp.ne.s32.totalorder %s135, %s151
    %p153 = scmp.eq.s32.totalorder %s17, 0
    %p154 = por %p152, %p153
    %p155 = scmp.le.s32.totalorder 1, %s11
    %p156 = scmp.lt.s32.totalorder %s11, 3
    %p157 = pnand %p155, %p156
    %p158 = pneg %p157
    // Predicated region
    $region9: #{up_2_skip_forward.1} parent=5 // pred_check
      _
    $region10: #{up_2_skip_forward.1} parent=5 // pred_check_branch
      %160 = sbr.rel (%p157) target = $region12
    $region11: #{up_2_skip_forward.1} parent=5 // pred_region
      %s161 = ssub.s32 %s11, 1
      // Predicated region
      $region13: #{up_2_skip_forward.1} parent=11 // pred_check
        %p162 = pneg %p58
      $region14: #{up_2_skip_forward.1} parent=11 // pred_check_branch
        %164 = sbr.rel (%p162) target = $region16
      $region15: #{up_2_skip_forward.1} parent=11 // pred_region
        _
      $region16: #{up_2_skip_forward.1} parent=11 // pred_fallthru
        _
      // Predicated region
      $region17: #{up_2_skip_forward.1} parent=11 // pred_check
        %p165 = pneg %p79
      $region18: #{up_2_skip_forward.1} parent=11 // pred_check_branch
        %167 = sbr.rel (%p165) target = $region20
      $region19: #{up_2_skip_forward.1} parent=11 // pred_region
        _
      $region20: #{up_2_skip_forward.1} parent=11 // pred_fallthru
        _
      // Predicated region
      $region21: #{up_2_skip_forward.1} parent=11 // pred_check
        %p168 = pneg %p100
      $region22: #{up_2_skip_forward.1} parent=11 // pred_check_branch
        %170 = sbr.rel (%p168) target = $region24
      $region23: #{up_2_skip_forward.1} parent=11 // pred_region
        _
      $region24: #{up_2_skip_forward.1} parent=11 // pred_fallthru
        _
      // Predicated region
      $region25: #{up_2_skip_forward.1} parent=11 // pred_check
        %p171 = pneg %p121
      $region26: #{up_2_skip_forward.1} parent=11 // pred_check_branch
        %173 = sbr.rel (%p171) target = $region28
      $region27: #{up_2_skip_forward.1} parent=11 // pred_region
        _
      $region28: #{up_2_skip_forward.1} parent=11 // pred_fallthru
        _
    $region12: #{up_2_skip_forward.1} parent=5 // pred_fallthru
      _
    %p174 = scmp.lt.s32.totalorder %s11, 2
    // Predicated region
    $region29: #{up_2_skip_forward.1} parent=5 // pred_check
      %p175 = pneg %p174
    $region30: #{up_2_skip_forward.1} parent=5 // pred_check_branch
      %177 = sbr.rel (%p175) target = $region32
    $region31: #{up_2_skip_forward.1} parent=5 // pred_region
      // Predicated region
      $region33: #{up_2_skip_forward.1} parent=31 // pred_check
        %p178 = pneg %p31
      $region34: #{up_2_skip_forward.1} parent=31 // pred_check_branch
        %180 = sbr.rel (%p178) target = $region36
      $region35: #{up_2_skip_forward.1} parent=31 // pred_region
        %p181 = scmp.lt.s32.totalorder %s11, 1
        %s182 = scalar_select %p181, %s11, 1
        %s183 = smul.addr %s182, 8
        %s184 = smul.addr %s183, 8
        %s185 = scalar_lea.vmem %s0, %s184
      $region36: #{up_2_skip_forward.1} parent=31 // pred_fallthru
        _
    $region32: #{up_2_skip_forward.1} parent=5 // pred_fallthru
      _
    %p186 = scmp.le.s32.totalorder 1, %s11
    %p187 = scmp.lt.s32.totalorder %s11, 3
    %p188 = pnand %p186, %p187
    %p189 = pneg %p188
    // Predicated region
    $region37: #{up_2_skip_forward.1} parent=5 // pred_check
      _
    $region38: #{up_2_skip_forward.1} parent=5 // pred_check_branch
      %191 = sbr.rel (%p188) target = $region40
    $region39: #{up_2_skip_forward.1} parent=5 // pred_region
      %s192 = ssub.s32 %s11, 1
      %p193 = scmp.lt.s32.totalorder %s16, 1
      %s194 = scalar_select %p193, %s16, 1
      %s195 = smul.addr %s194, 8
      %s196 = smul.addr %s195, 8
      %s197 = scalar_lea.vmem %s0, %s196
      %p198 = pneg %p37
      %p199 = pneg %p34
      %p200 = pneg %p58
      %p201 = pneg %p55
      %p202 = pneg %p79
      %p203 = pneg %p76
      %p204 = pneg %p100
      %p205 = pneg %p97
      %p206 = pneg %p121
      %p207 = pneg %p118
      %p208 = pneg %p147
      %p209 = pneg %p144
      %p210 = scmp.lt.s32.totalorder %s16, 1
      %s211 = scalar_select %p210, %s16, 1
      %s212 = smul.addr %s211, 8
      %s213 = smul.addr %s212, 8
      %s214 = scalar_lea.vmem %s5, %s213
      %p215 = scmp.lt.s32.totalorder %s16, 1
      %s216 = scalar_select %p215, %s16, 1
      %s217 = smul.addr %s216, 8
      %s218 = smul.addr %s217, 8
      %s219 = scalar_lea.vmem %s0, %s218
      %p220 = scmp.lt.s32.totalorder %s16, 1
      %s221 = scalar_select %p220, %s16, 1
      %s222 = smul.addr %s221, 8
      %s223 = smul.addr %s222, 8
      %s224 = scalar_lea.vmem %s5, %s223
      %v225 = vlaneseq
      %v226 = vand.u32 %v225, 127
      %v227 = vadd.s32 %v226, 128
      %v228 = vadd.s32 %v226, 256
      %v229 = vadd.s32 %v226, 384
      %v230 = vadd.s32 %v226, 512
      %v231 = vadd.s32 %v226, 640
      %v232 = vadd.s32 %v226, 768
      %v233 = vadd.s32 %v226, 896
      %vm234 = vcmp.lt.s32.totalorder %v226, 0
      %v235 = vsub.s32 0, %v226
      %v236 = vsel %vm234, %v235, %v226
      %v237 = vshrl.u32 %v236, 5
      %v238 = vand.u32 %v236, 31
      %v239 = vsub.s32 0, %v238
      %v240 = vsel %vm234, %v239, %v238
      %vm241 = vcmp.lt.s32.totalorder %v227, 0
      %v242 = vsub.s32 0, %v227
      %v243 = vsel %vm241, %v242, %v227
      %v244 = vshrl.u32 %v243, 5
      %v245 = vand.u32 %v243, 31
      %v246 = vsub.s32 0, %v245
      %v247 = vsel %vm241, %v246, %v245
      %vm248 = vcmp.lt.s32.totalorder %v228, 0
      %v249 = vsub.s32 0, %v228
      %v250 = vsel %vm248, %v249, %v228
      %v251 = vshrl.u32 %v250, 5
      %v252 = vand.u32 %v250, 31
      %v253 = vsub.s32 0, %v252
      %v254 = vsel %vm248, %v253, %v252
      %vm255 = vcmp.lt.s32.totalorder %v229, 0
      %v256 = vsub.s32 0, %v229
      %v257 = vsel %vm255, %v256, %v229
      %v258 = vshrl.u32 %v257, 5
      %v259 = vand.u32 %v257, 31
      %v260 = vsub.s32 0, %v259
      %v261 = vsel %vm255, %v260, %v259
      %vm262 = vcmp.lt.s32.totalorder %v230, 0
      %v263 = vsub.s32 0, %v230
      %v264 = vsel %vm262, %v263, %v230
      %v265 = vshrl.u32 %v264, 5
      %v266 = vand.u32 %v264, 31
      %v267 = vsub.s32 0, %v266
      %v268 = vsel %vm262, %v267, %v266
      %vm269 = vcmp.lt.s32.totalorder %v231, 0
      %v270 = vsub.s32 0, %v231
      %v271 = vsel %vm269, %v270, %v231
      %v272 = vshrl.u32 %v271, 5
      %v273 = vand.u32 %v271, 31
      %v274 = vsub.s32 0, %v273
      %v275 = vsel %vm269, %v274, %v273
      %vm276 = vcmp.lt.s32.totalorder %v232, 0
      %v277 = vsub.s32 0, %v232
      %v278 = vsel %vm276, %v277, %v232
      %v279 = vshrl.u32 %v278, 5
      %v280 = vand.u32 %v278, 31
      %v281 = vsub.s32 0, %v280
      %v282 = vsel %vm276, %v281, %v280
      %vm283 = vcmp.lt.s32.totalorder %v233, 0
      %v284 = vsub.s32 0, %v233
      %v285 = vsel %vm283, %v284, %v233
      %v286 = vshrl.u32 %v285, 5
      %v287 = vand.u32 %v285, 31
      %v288 = vsub.s32 0, %v287
      %v289 = vsel %vm283, %v288, %v287
      %vm290 = vcmp.ne.s32.totalorder %v240, 0
      %vm291 = vcmp.ne.s32.totalorder %v247, 0
      %vm292 = vcmp.ne.s32.totalorder %v254, 0
      %vm293 = vcmp.ne.s32.totalorder %v261, 0
      %vm294 = vcmp.ne.s32.totalorder %v268, 0
      %vm295 = vcmp.ne.s32.totalorder %v275, 0
      %vm296 = vcmp.ne.s32.totalorder %v282, 0
      %vm297 = vcmp.ne.s32.totalorder %v289, 0
      %vm298 = vcmp.lt.s32.totalorder %v240, 0
      %vm299 = vcmp.lt.s32.totalorder %v247, 0
      %vm300 = vcmp.lt.s32.totalorder %v254, 0
      %vm301 = vcmp.lt.s32.totalorder %v261, 0
      %vm302 = vcmp.lt.s32.totalorder %v268, 0
      %vm303 = vcmp.lt.s32.totalorder %v275, 0
      %vm304 = vcmp.lt.s32.totalorder %v282, 0
      %vm305 = vcmp.lt.s32.totalorder %v289, 0
      %vm306 = vmand %vm298, %vm290
      %vm307 = vmand %vm299, %vm291
      %vm308 = vmand %vm300, %vm292
      %vm309 = vmand %vm301, %vm293
      %vm310 = vmand %vm302, %vm294
      %vm311 = vmand %vm303, %vm295
      %vm312 = vmand %vm304, %vm296
      %vm313 = vmand %vm305, %vm297
      %v314 = vadd.s32 %v240, 32
      %v315 = vadd.s32 %v247, 32
      %v316 = vadd.s32 %v254, 32
      %v317 = vadd.s32 %v261, 32
      %v318 = vadd.s32 %v268, 32
      %v319 = vadd.s32 %v275, 32
      %v320 = vadd.s32 %v282, 32
      %v321 = vadd.s32 %v289, 32
      %v322 = vsel %vm306, %v314, %v240
      %v323 = vsel %vm307, %v315, %v247
      %v324 = vsel %vm308, %v316, %v254
      %v325 = vsel %vm309, %v317, %v261
      %v326 = vsel %vm310, %v318, %v268
      %v327 = vsel %vm311, %v319, %v275
      %v328 = vsel %vm312, %v320, %v282
      %v329 = vsel %vm313, %v321, %v289
      %vm330 = vcmp.ge.s32.totalorder %v322, 1
      %vm331 = vcmp.ge.s32.totalorder %v323, 1
      %vm332 = vcmp.ge.s32.totalorder %v324, 1
      %vm333 = vcmp.ge.s32.totalorder %v325, 1
      %vm334 = vcmp.ge.s32.totalorder %v326, 1
      %vm335 = vcmp.ge.s32.totalorder %v327, 1
      %vm336 = vcmp.ge.s32.totalorder %v328, 1
      %vm337 = vcmp.ge.s32.totalorder %v329, 1
      %v338 = vsel %vm330, 1, 0
      %v339 = vsel %vm331, 1, 0
      %v340 = vsel %vm332, 1, 0
      %v341 = vsel %vm333, 1, 0
      %v342 = vsel %vm334, 1, 0
      %v343 = vsel %vm335, 1, 0
      %v344 = vsel %vm336, 1, 0
      %v345 = vsel %vm337, 1, 0
      %v346 = vcvt.s32.f32 %v338
      %v347 = vcvt.s32.f32 %v339
      %v348 = vcvt.s32.f32 %v340
      %v349 = vcvt.s32.f32 %v341
      %v350 = vcvt.s32.f32 %v342
      %v351 = vcvt.s32.f32 %v343
      %v352 = vcvt.s32.f32 %v344
      %v353 = vcvt.s32.f32 %v345
      %vm354 = vcmp.le.s32.totalorder %v322, 30
      %vm355 = vcmp.le.s32.totalorder %v323, 30
      %vm356 = vcmp.le.s32.totalorder %v324, 30
      %vm357 = vcmp.le.s32.totalorder %v325, 30
      %vm358 = vcmp.le.s32.totalorder %v326, 30
      %vm359 = vcmp.le.s32.totalorder %v327, 30
      %vm360 = vcmp.le.s32.totalorder %v328, 30
      %vm361 = vcmp.le.s32.totalorder %v329, 30
      %v362 = vsel %vm354, 1, 0
      %v363 = vsel %vm355, 1, 0
      %v364 = vsel %vm356, 1, 0
      %v365 = vsel %vm357, 1, 0
      %v366 = vsel %vm358, 1, 0
      %v367 = vsel %vm359, 1, 0
      %v368 = vsel %vm360, 1, 0
      %v369 = vsel %vm361, 1, 0
      %v370 = vcvt.s32.f32 %v362
      %v371 = vcvt.s32.f32 %v363
      %v372 = vcvt.s32.f32 %v364
      %v373 = vcvt.s32.f32 %v365
      %v374 = vcvt.s32.f32 %v366
      %v375 = vcvt.s32.f32 %v367
      %v376 = vcvt.s32.f32 %v368
      %v377 = vcvt.s32.f32 %v369
      %v378 = vld [vmem:[%s219] sm:$0xff]
      %v379 = vld [vmem:[%s219 + $0x8] sm:$0xff]
      %v380 = vld [vmem:[%s219 + $0x10] sm:$0xff]
      %v381 = vld [vmem:[%s219 + $0x18] sm:$0xff]
      %v382 = vld [vmem:[%s219 + $0x20] sm:$0xff]
      %v383 = vld [vmem:[%s219 + $0x28] sm:$0xff]
      %v384 = vld [vmem:[%s219 + $0x30] sm:$0xff]
      %v385 = vld [vmem:[%s219 + $0x38] sm:$0xff]
      %v386 = vld [vmem:[%s1] sm:$0xf]
      %395 = vrot.lane.b32.xlu0 %v378, 33
      %v396 = vpop.permute.xlu0 %395
      %397 = vrot.lane.b32.xlu0 %v379, 33
      %v398 = vpop.permute.xlu0 %397
      %399 = vrot.lane.b32.xlu0 %v380, 33
      %v400 = vpop.permute.xlu0 %399
      %401 = vrot.lane.b32.xlu0 %v381, 33
      %v402 = vpop.permute.xlu0 %401
      %403 = vrot.lane.b32.xlu0 %v382, 33
      %v404 = vpop.permute.xlu0 %403
      %405 = vrot.lane.b32.xlu0 %v383, 33
      %v406 = vpop.permute.xlu0 %405
      %407 = vrot.lane.b32.xlu0 %v384, 33
      %v408 = vpop.permute.xlu0 %407
      %409 = vrot.lane.b32.xlu0 %v385, 33
      %v410 = vpop.permute.xlu0 %409
      %vm411 = vcmask 269312
      %v412 = vsel %vm411, %v396, %v398
      %v413 = vsel %vm411, %v398, %v400
      %v414 = vsel %vm411, %v400, %v402
      %v415 = vsel %vm411, %v402, %v404
      %v416 = vsel %vm411, %v404, %v406
      %v417 = vsel %vm411, %v406, %v408
      %v418 = vsel %vm411, %v408, %v410
      %v427 = vsel %vm411, 0.0, %v396
      %v428 = vmul.f32 %v427, %v346
      %v429 = vmul.f32 %v412, %v347
      %v430 = vmul.f32 %v413, %v348
      %v431 = vmul.f32 %v414, %v349
      %v432 = vmul.f32 %v415, %v350
      %v433 = vmul.f32 %v416, %v351
      %v434 = vmul.f32 %v417, %v352
      %v435 = vmul.f32 %v418, %v353
      %436 = vrot.lane.b32.xlu0 %v378, 32
      %v437 = vpop.permute.xlu0 %436
      %438 = vrot.lane.b32.xlu0 %v379, 32
      %v439 = vpop.permute.xlu0 %438
      %440 = vrot.lane.b32.xlu0 %v380, 32
      %v441 = vpop.permute.xlu0 %440
      %442 = vrot.lane.b32.xlu0 %v381, 32
      %v443 = vpop.permute.xlu0 %442
      %444 = vrot.lane.b32.xlu0 %v382, 32
      %v445 = vpop.permute.xlu0 %444
      %446 = vrot.lane.b32.xlu0 %v383, 32
      %v447 = vpop.permute.xlu0 %446
      %448 = vrot.lane.b32.xlu0 %v384, 32
      %v449 = vpop.permute.xlu0 %448
      %450 = vrot.lane.b32.xlu0 %v385, 32
      %v451 = vpop.permute.xlu0 %450
      %vm452 = vcmask 261120
      %v453 = vsel %vm452, %v437, %v439
      %v454 = vsel %vm452, %v439, %v441
      %v455 = vsel %vm452, %v441, %v443
      %v456 = vsel %vm452, %v443, %v445
      %v457 = vsel %vm452, %v445, %v447
      %v458 = vsel %vm452, %v447, %v449
      %v459 = vsel %vm452, %v449, %v451
      %v468 = vsel %vm452, 0.0, %v437
      %469 = vrot.lane.b32.xlu0 %v378, 31
      %v470 = vpop.permute.xlu0 %469
      %471 = vrot.lane.b32.xlu0 %v379, 31
      %v472 = vpop.permute.xlu0 %471
      %473 = vrot.lane.b32.xlu0 %v380, 31
      %v474 = vpop.permute.xlu0 %473
      %475 = vrot.lane.b32.xlu0 %v381, 31
      %v476 = vpop.permute.xlu0 %475
      %477 = vrot.lane.b32.xlu0 %v382, 31
      %v478 = vpop.permute.xlu0 %477
      %479 = vrot.lane.b32.xlu0 %v383, 31
      %v480 = vpop.permute.xlu0 %479
      %481 = vrot.lane.b32.xlu0 %v384, 31
      %v482 = vpop.permute.xlu0 %481
      %483 = vrot.lane.b32.xlu0 %v385, 31
      %v484 = vpop.permute.xlu0 %483
      %vm485 = vcmask 252928
      %v486 = vsel %vm485, %v470, %v472
      %v487 = vsel %vm485, %v472, %v474
      %v488 = vsel %vm485, %v474, %v476
      %v489 = vsel %vm485, %v476, %v478
      %v490 = vsel %vm485, %v478, %v480
      %v491 = vsel %vm485, %v480, %v482
      %v492 = vsel %vm485, %v482, %v484
      %v501 = vsel %vm485, 0.0, %v470
      %v502 = vmul.f32 %v501, %v370
      %v503 = vmul.f32 %v486, %v371
      %v504 = vmul.f32 %v487, %v372
      %v505 = vmul.f32 %v488, %v373
      %v506 = vmul.f32 %v489, %v374
      %v507 = vmul.f32 %v490, %v375
      %v508 = vmul.f32 %v491, %v376
      %v509 = vmul.f32 %v492, %v377
      %510 = vrot.lane.b32.xlu0 %v378, 1
      %v511 = vpop.permute.xlu0 %510
      %512 = vrot.lane.b32.xlu0 %v379, 1
      %v513 = vpop.permute.xlu0 %512
      %514 = vrot.lane.b32.xlu0 %v380, 1
      %v515 = vpop.permute.xlu0 %514
      %516 = vrot.lane.b32.xlu0 %v381, 1
      %v517 = vpop.permute.xlu0 %516
      %518 = vrot.lane.b32.xlu0 %v382, 1
      %v519 = vpop.permute.xlu0 %518
      %520 = vrot.lane.b32.xlu0 %v383, 1
      %v521 = vpop.permute.xlu0 %520
      %522 = vrot.lane.b32.xlu0 %v384, 1
      %v523 = vpop.permute.xlu0 %522
      %524 = vrot.lane.b32.xlu0 %v385, 1
      %v525 = vpop.permute.xlu0 %524
      %vm526 = vcmask 7168
      %v527 = vsel %vm526, %v511, %v513
      %v528 = vsel %vm526, %v513, %v515
      %v529 = vsel %vm526, %v515, %v517
      %v530 = vsel %vm526, %v517, %v519
      %v531 = vsel %vm526, %v519, %v521
      %v532 = vsel %vm526, %v521, %v523
      %v533 = vsel %vm526, %v523, %v525
      %v542 = vsel %vm526, 0.0, %v511
      %v543 = vmul.f32 %v542, %v346
      %v544 = vmul.f32 %v527, %v347
      %v545 = vmul.f32 %v528, %v348
      %v546 = vmul.f32 %v529, %v349
      %v547 = vmul.f32 %v530, %v350
      %v548 = vmul.f32 %v531, %v351
      %v549 = vmul.f32 %v532, %v352
      %v550 = vmul.f32 %v533, %v353
      %551 = vrot.lane.b32.xlu0 %v378, 127
      %v552 = vpop.permute.xlu0 %551
      %553 = vrot.lane.b32.xlu0 %v379, 127
      %v554 = vpop.permute.xlu0 %553
      %555 = vrot.lane.b32.xlu0 %v380, 127
      %v556 = vpop.permute.xlu0 %555
      %557 = vrot.lane.b32.xlu0 %v381, 127
      %v558 = vpop.permute.xlu0 %557
      %559 = vrot.lane.b32.xlu0 %v382, 127
      %v560 = vpop.permute.xlu0 %559
      %561 = vrot.lane.b32.xlu0 %v383, 127
      %v562 = vpop.permute.xlu0 %561
      %563 = vrot.lane.b32.xlu0 %v384, 127
      %v564 = vpop.permute.xlu0 %563
      %565 = vrot.lane.b32.xlu0 %v385, 127
      %v566 = vpop.permute.xlu0 %565
      %vm567 = vcmask 1039360
      %v568 = vsel %vm567, %v552, %v554
      %v569 = vsel %vm567, %v554, %v556
      %v570 = vsel %vm567, %v556, %v558
      %v571 = vsel %vm567, %v558, %v560
      %v572 = vsel %vm567, %v560, %v562
      %v573 = vsel %vm567, %v562, %v564
      %v574 = vsel %vm567, %v564, %v566
      %v583 = vsel %vm567, %v566, 0.0
      %v584 = vmul.f32 %v568, %v370
      %v585 = vmul.f32 %v569, %v371
      %v586 = vmul.f32 %v570, %v372
      %v587 = vmul.f32 %v571, %v373
      %v588 = vmul.f32 %v572, %v374
      %v589 = vmul.f32 %v573, %v375
      %v590 = vmul.f32 %v574, %v376
      %v591 = vmul.f32 %v583, %v377
      %592 = vrot.lane.b32.xlu0 %v378, 97
      %v593 = vpop.permute.xlu0 %592
      %594 = vrot.lane.b32.xlu0 %v379, 97
      %v595 = vpop.permute.xlu0 %594
      %596 = vrot.lane.b32.xlu0 %v380, 97
      %v597 = vpop.permute.xlu0 %596
      %598 = vrot.lane.b32.xlu0 %v381, 97
      %v599 = vpop.permute.xlu0 %598
      %600 = vrot.lane.b32.xlu0 %v382, 97
      %v601 = vpop.permute.xlu0 %600
      %602 = vrot.lane.b32.xlu0 %v383, 97
      %v603 = vpop.permute.xlu0 %602
      %604 = vrot.lane.b32.xlu0 %v384, 97
      %v605 = vpop.permute.xlu0 %604
      %606 = vrot.lane.b32.xlu0 %v385, 97
      %v607 = vpop.permute.xlu0 %606
      %vm608 = vcmask 793600
      %v609 = vsel %vm608, %v593, %v595
      %v610 = vsel %vm608, %v595, %v597
      %v611 = vsel %vm608, %v597, %v599
      %v612 = vsel %vm608, %v599, %v601
      %v613 = vsel %vm608, %v601, %v603
      %v614 = vsel %vm608, %v603, %v605
      %v615 = vsel %vm608, %v605, %v607
      %v624 = vsel %vm608, %v607, 0.0
      %v625 = vmul.f32 %v609, %v346
      %v626 = vmul.f32 %v610, %v347
      %v627 = vmul.f32 %v611, %v348
      %v628 = vmul.f32 %v612, %v349
      %v629 = vmul.f32 %v613, %v350
      %v630 = vmul.f32 %v614, %v351
      %v631 = vmul.f32 %v615, %v352
      %v632 = vmul.f32 %v624, %v353
      %633 = vrot.lane.b32.xlu0 %v378, 96
      %v634 = vpop.permute.xlu0 %633
      %635 = vrot.lane.b32.xlu0 %v379, 96
      %v636 = vpop.permute.xlu0 %635
      %637 = vrot.lane.b32.xlu0 %v380, 96
      %v638 = vpop.permute.xlu0 %637
      %639 = vrot.lane.b32.xlu0 %v381, 96
      %v640 = vpop.permute.xlu0 %639
      %641 = vrot.lane.b32.xlu0 %v382, 96
      %v642 = vpop.permute.xlu0 %641
      %643 = vrot.lane.b32.xlu0 %v383, 96
      %v644 = vpop.permute.xlu0 %643
      %645 = vrot.lane.b32.xlu0 %v384, 96
      %v646 = vpop.permute.xlu0 %645
      %647 = vrot.lane.b32.xlu0 %v385, 96
      %v648 = vpop.permute.xlu0 %647
      %vm649 = vcmask 785408
      %v650 = vsel %vm649, %v634, %v636
      %v651 = vsel %vm649, %v636, %v638
      %v652 = vsel %vm649, %v638, %v640
      %v653 = vsel %vm649, %v640, %v642
      %v654 = vsel %vm649, %v642, %v644
      %v655 = vsel %vm649, %v644, %v646
      %v656 = vsel %vm649, %v646, %v648
      %v665 = vsel %vm649, %v648, 0.0
      %666 = vrot.lane.b32.xlu0 %v378, 95
      %v667 = vpop.permute.xlu0 %666
      %668 = vrot.lane.b32.xlu0 %v379, 95
      %v669 = vpop.permute.xlu0 %668
      %670 = vrot.lane.b32.xlu0 %v380, 95
      %v671 = vpop.permute.xlu0 %670
      %672 = vrot.lane.b32.xlu0 %v381, 95
      %v673 = vpop.permute.xlu0 %672
      %674 = vrot.lane.b32.xlu0 %v382, 95
      %v675 = vpop.permute.xlu0 %674
      %676 = vrot.lane.b32.xlu0 %v383, 95
      %v677 = vpop.permute.xlu0 %676
      %678 = vrot.lane.b32.xlu0 %v384, 95
      %v679 = vpop.permute.xlu0 %678
      %680 = vrot.lane.b32.xlu0 %v385, 95
      %v681 = vpop.permute.xlu0 %680
      %vm682 = vcmask 777216
      %v683 = vsel %vm682, %v667, %v669
      %v684 = vsel %vm682, %v669, %v671
      %v685 = vsel %vm682, %v671, %v673
      %v686 = vsel %vm682, %v673, %v675
      %v687 = vsel %vm682, %v675, %v677
      %v688 = vsel %vm682, %v677, %v679
      %v689 = vsel %vm682, %v679, %v681
      %v698 = vsel %vm682, %v681, 0.0
      %v699 = vmul.f32 %v683, %v370
      %v700 = vmul.f32 %v684, %v371
      %v701 = vmul.f32 %v685, %v372
      %v702 = vmul.f32 %v686, %v373
      %v703 = vmul.f32 %v687, %v374
      %v704 = vmul.f32 %v688, %v375
      %v705 = vmul.f32 %v689, %v376
      %v706 = vmul.f32 %v698, %v377
      %v707 = vld [vmem:[%s2] sm:$0xf]
      %709 = vset.pattern.permute.xlu0 0
      %710 = vperm.xlu0 %709, %v707
      %v711 = vpop.permute.xlu0 %710
      %vm713 = vcmask 588800
      %v715 = vsel %vm713, %v386, 0
      %717 = vmatprep.subr.mxu0 0.0
      %718 = vmatpush1.msra.mxu0 0.0
      %719 = vmatprep.subr.mxu0 0.0
      %720 = vmatpush1.msra.mxu0 0.0
      %721 = vmatprep.subr.mxu0 0.0
      %722 = vmatpush1.msra.mxu0 0.0
      %723 = vmatprep.subr.mxu0 0.0
      %724 = vmatpush1.msra.mxu0 0.0
      %725 = vmatprep.subr.mxu0 0.0
      %726 = vmatpush1.msra.mxu0 0.0
      %727 = vmatprep.subr.mxu0 0.0
      %728 = vmatpush1.msra.mxu0 0.0
      %729 = vmatprep.subr.mxu0 0.0
      %730 = vmatpush1.msra.mxu0 0.0
      %731 = vmatprep.subr.mxu0 %v700
      %732 = vmatpush1.msra.mxu0 %v699
      %733 = vmatprep.subr.mxu0 %v651
      %734 = vmatpush1.msra.mxu0 %v650
      %735 = vmatprep.subr.mxu0 %v626
      %736 = vmatpush1.msra.mxu0 %v625
      %737 = vmatprep.subr.mxu0 %v585
      %738 = vmatpush1.msra.mxu0 %v584
      %739 = vmatprep.subr.mxu0 %v379
      %740 = vmatpush1.msra.mxu0 %v378
      %741 = vmatprep.subr.mxu0 %v544
      %742 = vmatpush1.msra.mxu0 %v543
      %743 = vmatprep.subr.mxu0 %v503
      %744 = vmatpush1.msra.mxu0 %v502
      %745 = vmatprep.subr.mxu0 %v453
      %746 = vmatpush1.msra.mxu0 %v468
      %747 = vmatprep.subr.mxu0 %v429
      %748 = vmatpush1.msra.mxu0 %v428
      %749 = vmatprep.subr.mxu0 0.0
      %750 = vmatpush2.msra.mxu0 0.0
      %751 = vmatprep.subr.mxu0 0.0
      %752 = vmatpush2.msra.mxu0 0.0
      %753 = vmatprep.subr.mxu0 0.0
      %754 = vmatpush2.msra.mxu0 0.0
      %755 = vmatprep.subr.mxu0 0.0
      %756 = vmatpush2.msra.mxu0 0.0
      %757 = vmatprep.subr.mxu0 0.0
      %758 = vmatpush2.msra.mxu0 0.0
      %759 = vmatprep.subr.mxu0 0.0
      %760 = vmatpush2.msra.mxu0 0.0
      %761 = vmatprep.subr.mxu0 0.0
      %762 = vmatpush2.msra.mxu0 0.0
      %763 = vmatprep.subr.mxu0 0.0
      %764 = vmatpush2.msra.mxu0 0.0
      %765 = vmatprep.subr.mxu0 0.0
      %766 = vmatpush2.msra.mxu0 0.0
      %767 = vmatprep.subr.mxu0 0.0
      %768 = vmatpush2.msra.mxu0 0.0
      %769 = vmatprep.subr.mxu0 0.0
      %770 = vmatpush2.msra.mxu0 0.0
      %771 = vmatprep.subr.mxu0 0.0
      %772 = vmatpush2.msra.mxu0 0.0
      %773 = vmatprep.subr.mxu0 0.0
      %774 = vmatpush2.msra.mxu0 0.0
      %775 = vmatprep.subr.mxu0 0.0
      %776 = vmatpush2.msra.mxu0 0.0
      %777 = vmatprep.subr.mxu0 0.0
      %778 = vmatpush2.msra.mxu0 0.0
      %779 = vmatprep.subr.mxu0 0.0
      %780 = vmatpush2.msra.mxu0 0.0
      %781 = vmatprep.mubr.f32.mxu0 0.0
      %782 = vmatmul.mubr.f32.gmra.mxu0 %v715
      %v783 = vpop.f32.mrf.mxu0
      %v784 = vadd.f32 %v711, %v783
      %v785 = vpop.f32.mrf.mxu0
      %v786 = vadd.f32 %v711, %v785
      %787 = vdwg.mxu0
      %788 = vmatprep.subr.mxu0 0.0
      %789 = vmatpush1.msra.mxu0 0.0
      %790 = vmatprep.subr.mxu0 0.0
      %791 = vmatpush1.msra.mxu0 0.0
      %792 = vmatprep.subr.mxu0 0.0
      %793 = vmatpush1.msra.mxu0 0.0
      %794 = vmatprep.subr.mxu0 0.0
      %795 = vmatpush1.msra.mxu0 0.0
      %796 = vmatprep.subr.mxu0 0.0
      %797 = vmatpush1.msra.mxu0 0.0
      %798 = vmatprep.subr.mxu0 0.0
      %799 = vmatpush1.msra.mxu0 0.0
      %800 = vmatprep.subr.mxu0 0.0
      %801 = vmatpush1.msra.mxu0 0.0
      %802 = vmatprep.subr.mxu0 %v702
      %803 = vmatpush1.msra.mxu0 %v701
      %804 = vmatprep.subr.mxu0 %v653
      %805 = vmatpush1.msra.mxu0 %v652
      %806 = vmatprep.subr.mxu0 %v628
      %807 = vmatpush1.msra.mxu0 %v627
      %808 = vmatprep.subr.mxu0 %v587
      %809 = vmatpush1.msra.mxu0 %v586
      %810 = vmatprep.subr.mxu0 %v381
      %811 = vmatpush1.msra.mxu0 %v380
      %812 = vmatprep.subr.mxu0 %v546
      %813 = vmatpush1.msra.mxu0 %v545
      %814 = vmatprep.subr.mxu0 %v505
      %815 = vmatpush1.msra.mxu0 %v504
      %816 = vmatprep.subr.mxu0 %v455
      %817 = vmatpush1.msra.mxu0 %v454
      %818 = vmatprep.subr.mxu0 %v431
      %819 = vmatpush1.msra.mxu0 %v430
      %820 = vmatprep.subr.mxu0 0.0
      %821 = vmatpush2.msra.mxu0 0.0
      %822 = vmatprep.subr.mxu0 0.0
      %823 = vmatpush2.msra.mxu0 0.0
      %824 = vmatprep.subr.mxu0 0.0
      %825 = vmatpush2.msra.mxu0 0.0
      %826 = vmatprep.subr.mxu0 0.0
      %827 = vmatpush2.msra.mxu0 0.0
      %828 = vmatprep.subr.mxu0 0.0
      %829 = vmatpush2.msra.mxu0 0.0
      %830 = vmatprep.subr.mxu0 0.0
      %831 = vmatpush2.msra.mxu0 0.0
      %832 = vmatprep.subr.mxu0 0.0
      %833 = vmatpush2.msra.mxu0 0.0
      %834 = vmatprep.subr.mxu0 0.0
      %835 = vmatpush2.msra.mxu0 0.0
      %836 = vmatprep.subr.mxu0 0.0
      %837 = vmatpush2.msra.mxu0 0.0
      %838 = vmatprep.subr.mxu0 0.0
      %839 = vmatpush2.msra.mxu0 0.0
      %840 = vmatprep.subr.mxu0 0.0
      %841 = vmatpush2.msra.mxu0 0.0
      %842 = vmatprep.subr.mxu0 0.0
      %843 = vmatpush2.msra.mxu0 0.0
      %844 = vmatprep.subr.mxu0 0.0
      %845 = vmatpush2.msra.mxu0 0.0
      %846 = vmatprep.subr.mxu0 0.0
      %847 = vmatpush2.msra.mxu0 0.0
      %848 = vmatprep.subr.mxu0 0.0
      %849 = vmatpush2.msra.mxu0 0.0
      %850 = vmatprep.subr.mxu0 0.0
      %851 = vmatpush2.msra.mxu0 0.0
      %852 = vmatprep.mubr.f32.mxu0 0.0
      %853 = vmatmul.mubr.f32.gmra.mxu0 %v715
      %v854 = vpop.f32.mrf.mxu0
      %v855 = vadd.f32 %v711, %v854
      %v856 = vpop.f32.mrf.mxu0
      %v857 = vadd.f32 %v711, %v856
      %858 = vdwg.mxu0
      %859 = vmatprep.subr.mxu0 0.0
      %860 = vmatpush1.msra.mxu0 0.0
      %861 = vmatprep.subr.mxu0 0.0
      %862 = vmatpush1.msra.mxu0 0.0
      %863 = vmatprep.subr.mxu0 0.0
      %864 = vmatpush1.msra.mxu0 0.0
      %865 = vmatprep.subr.mxu0 0.0
      %866 = vmatpush1.msra.mxu0 0.0
      %867 = vmatprep.subr.mxu0 0.0
      %868 = vmatpush1.msra.mxu0 0.0
      %869 = vmatprep.subr.mxu0 0.0
      %870 = vmatpush1.msra.mxu0 0.0
      %871 = vmatprep.subr.mxu0 0.0
      %872 = vmatpush1.msra.mxu0 0.0
      %873 = vmatprep.subr.mxu0 %v704
      %874 = vmatpush1.msra.mxu0 %v703
      %875 = vmatprep.subr.mxu0 %v655
      %876 = vmatpush1.msra.mxu0 %v654
      %877 = vmatprep.subr.mxu0 %v630
      %878 = vmatpush1.msra.mxu0 %v629
      %879 = vmatprep.subr.mxu0 %v589
      %880 = vmatpush1.msra.mxu0 %v588
      %881 = vmatprep.subr.mxu0 %v383
      %882 = vmatpush1.msra.mxu0 %v382
      %883 = vmatprep.subr.mxu0 %v548
      %884 = vmatpush1.msra.mxu0 %v547
      %885 = vmatprep.subr.mxu0 %v507
      %886 = vmatpush1.msra.mxu0 %v506
      %887 = vmatprep.subr.mxu0 %v457
      %888 = vmatpush1.msra.mxu0 %v456
      %889 = vmatprep.subr.mxu0 %v433
      %890 = vmatpush1.msra.mxu0 %v432
      %891 = vmatprep.subr.mxu0 0.0
      %892 = vmatpush2.msra.mxu0 0.0
      %893 = vmatprep.subr.mxu0 0.0
      %894 = vmatpush2.msra.mxu0 0.0
      %895 = vmatprep.subr.mxu0 0.0
      %896 = vmatpush2.msra.mxu0 0.0
      %897 = vmatprep.subr.mxu0 0.0
      %898 = vmatpush2.msra.mxu0 0.0
      %899 = vmatprep.subr.mxu0 0.0
      %900 = vmatpush2.msra.mxu0 0.0
      %901 = vmatprep.subr.mxu0 0.0
      %902 = vmatpush2.msra.mxu0 0.0
      %903 = vmatprep.subr.mxu0 0.0
      %904 = vmatpush2.msra.mxu0 0.0
      %905 = vmatprep.subr.mxu0 0.0
      %906 = vmatpush2.msra.mxu0 0.0
      %907 = vmatprep.subr.mxu0 0.0
      %908 = vmatpush2.msra.mxu0 0.0
      %909 = vmatprep.subr.mxu0 0.0
      %910 = vmatpush2.msra.mxu0 0.0
      %911 = vmatprep.subr.mxu0 0.0
      %912 = vmatpush2.msra.mxu0 0.0
      %913 = vmatprep.subr.mxu0 0.0
      %914 = vmatpush2.msra.mxu0 0.0
      %915 = vmatprep.subr.mxu0 0.0
      %916 = vmatpush2.msra.mxu0 0.0
      %917 = vmatprep.subr.mxu0 0.0
      %918 = vmatpush2.msra.mxu0 0.0
      %919 = vmatprep.subr.mxu0 0.0
      %920 = vmatpush2.msra.mxu0 0.0
      %921 = vmatprep.subr.mxu0 0.0
      %922 = vmatpush2.msra.mxu0 0.0
      %923 = vmatprep.mubr.f32.mxu0 0.0
      %924 = vmatmul.mubr.f32.gmra.mxu0 %v715
      %v925 = vpop.f32.mrf.mxu0
      %v926 = vadd.f32 %v711, %v925
      %v927 = vpop.f32.mrf.mxu0
      %v928 = vadd.f32 %v711, %v927
      %929 = vdwg.mxu0
      %930 = vmatprep.subr.mxu0 0.0
      %931 = vmatpush1.msra.mxu0 0.0
      %932 = vmatprep.subr.mxu0 0.0
      %933 = vmatpush1.msra.mxu0 0.0
      %934 = vmatprep.subr.mxu0 0.0
      %935 = vmatpush1.msra.mxu0 0.0
      %936 = vmatprep.subr.mxu0 0.0
      %937 = vmatpush1.msra.mxu0 0.0
      %938 = vmatprep.subr.mxu0 0.0
      %939 = vmatpush1.msra.mxu0 0.0
      %940 = vmatprep.subr.mxu0 0.0
      %941 = vmatpush1.msra.mxu0 0.0
      %942 = vmatprep.subr.mxu0 0.0
      %943 = vmatpush1.msra.mxu0 0.0
      %944 = vmatprep.subr.mxu0 %v706
      %945 = vmatpush1.msra.mxu0 %v705
      %946 = vmatprep.subr.mxu0 %v665
      %947 = vmatpush1.msra.mxu0 %v656
      %948 = vmatprep.subr.mxu0 %v632
      %949 = vmatpush1.msra.mxu0 %v631
      %950 = vmatprep.subr.mxu0 %v591
      %951 = vmatpush1.msra.mxu0 %v590
      %952 = vmatprep.subr.mxu0 %v385
      %953 = vmatpush1.msra.mxu0 %v384
      %954 = vmatprep.subr.mxu0 %v550
      %955 = vmatpush1.msra.mxu0 %v549
      %956 = vmatprep.subr.mxu0 %v509
      %957 = vmatpush1.msra.mxu0 %v508
      %958 = vmatprep.subr.mxu0 %v459
      %959 = vmatpush1.msra.mxu0 %v458
      %960 = vmatprep.subr.mxu0 %v435
      %961 = vmatpush1.msra.mxu0 %v434
      %962 = vmatprep.subr.mxu0 0.0
      %963 = vmatpush2.msra.mxu0 0.0
      %964 = vmatprep.subr.mxu0 0.0
      %965 = vmatpush2.msra.mxu0 0.0
      %966 = vmatprep.subr.mxu0 0.0
      %967 = vmatpush2.msra.mxu0 0.0
      %968 = vmatprep.subr.mxu0 0.0
      %969 = vmatpush2.msra.mxu0 0.0
      %970 = vmatprep.subr.mxu0 0.0
      %971 = vmatpush2.msra.mxu0 0.0
      %972 = vmatprep.subr.mxu0 0.0
      %973 = vmatpush2.msra.mxu0 0.0
      %974 = vmatprep.subr.mxu0 0.0
      %975 = vmatpush2.msra.mxu0 0.0
      %976 = vmatprep.subr.mxu0 0.0
      %977 = vmatpush2.msra.mxu0 0.0
      %978 = vmatprep.subr.mxu0 0.0
      %979 = vmatpush2.msra.mxu0 0.0
      %980 = vmatprep.subr.mxu0 0.0
      %981 = vmatpush2.msra.mxu0 0.0
      %982 = vmatprep.subr.mxu0 0.0
      %983 = vmatpush2.msra.mxu0 0.0
      %984 = vmatprep.subr.mxu0 0.0
      %985 = vmatpush2.msra.mxu0 0.0
      %986 = vmatprep.subr.mxu0 0.0
      %987 = vmatpush2.msra.mxu0 0.0
      %988 = vmatprep.subr.mxu0 0.0
      %989 = vmatpush2.msra.mxu0 0.0
      %990 = vmatprep.subr.mxu0 0.0
      %991 = vmatpush2.msra.mxu0 0.0
      %992 = vmatprep.subr.mxu0 0.0
      %993 = vmatpush2.msra.mxu0 0.0
      %994 = vmatprep.mubr.f32.mxu0 0.0
      %995 = vmatmul.mubr.f32.gmra.mxu0 %v715
      %v996 = vpop.f32.mrf.mxu0
      %v997 = vadd.f32 %v711, %v996
      %v998 = vpop.f32.mrf.mxu0
      %v999 = vadd.f32 %v711, %v998
      %1000 = vdwg.mxu0
      %v1001 = vmax.f32 %v784, 0.0
      %v1002 = vmax.f32 %v786, 0.0
      %v1003 = vmax.f32 %v855, 0.0
      %v1004 = vmax.f32 %v857, 0.0
      %v1005 = vmax.f32 %v926, 0.0
      %v1006 = vmax.f32 %v928, 0.0
      %v1007 = vmax.f32 %v997, 0.0
      %v1008 = vmax.f32 %v999, 0.0
      %v1009 = vld [vmem:[%s3] sm:$0xff]
      %1018 = vrot.lane.b32.xlu0 %v1001, 33
      %v1019 = vpop.permute.xlu0 %1018
      %1020 = vrot.lane.b32.xlu0 %v1002, 33
      %v1021 = vpop.permute.xlu0 %1020
      %1022 = vrot.lane.b32.xlu0 %v1003, 33
      %v1023 = vpop.permute.xlu0 %1022
      %1024 = vrot.lane.b32.xlu0 %v1004, 33
      %v1025 = vpop.permute.xlu0 %1024
      %1026 = vrot.lane.b32.xlu0 %v1005, 33
      %v1027 = vpop.permute.xlu0 %1026
      %1028 = vrot.lane.b32.xlu0 %v1006, 33
      %v1029 = vpop.permute.xlu0 %1028
      %1030 = vrot.lane.b32.xlu0 %v1007, 33
      %v1031 = vpop.permute.xlu0 %1030
      %1032 = vrot.lane.b32.xlu0 %v1008, 33
      %v1033 = vpop.permute.xlu0 %1032
      %v1034 = vsel %vm411, %v1019, %v1021
      %v1035 = vsel %vm411, %v1021, %v1023
      %v1036 = vsel %vm411, %v1023, %v1025
      %v1037 = vsel %vm411, %v1025, %v1027
      %v1038 = vsel %vm411, %v1027, %v1029
      %v1039 = vsel %vm411, %v1029, %v1031
      %v1040 = vsel %vm411, %v1031, %v1033
      %v1049 = vsel %vm411, 0.0, %v1019
      %v1050 = vmul.f32 %v1049, %v346
      %v1051 = vmul.f32 %v1034, %v347
      %v1052 = vmul.f32 %v1035, %v348
      %v1053 = vmul.f32 %v1036, %v349
      %v1054 = vmul.f32 %v1037, %v350
      %v1055 = vmul.f32 %v1038, %v351
      %v1056 = vmul.f32 %v1039, %v352
      %v1057 = vmul.f32 %v1040, %v353
      %1058 = vrot.lane.b32.xlu0 %v1001, 32
      %v1059 = vpop.permute.xlu0 %1058
      %1060 = vrot.lane.b32.xlu0 %v1002, 32
      %v1061 = vpop.permute.xlu0 %1060
      %1062 = vrot.lane.b32.xlu0 %v1003, 32
      %v1063 = vpop.permute.xlu0 %1062
      %1064 = vrot.lane.b32.xlu0 %v1004, 32
      %v1065 = vpop.permute.xlu0 %1064
      %1066 = vrot.lane.b32.xlu0 %v1005, 32
      %v1067 = vpop.permute.xlu0 %1066
      %1068 = vrot.lane.b32.xlu0 %v1006, 32
      %v1069 = vpop.permute.xlu0 %1068
      %1070 = vrot.lane.b32.xlu0 %v1007, 32
      %v1071 = vpop.permute.xlu0 %1070
      %1072 = vrot.lane.b32.xlu0 %v1008, 32
      %v1073 = vpop.permute.xlu0 %1072
      %v1074 = vsel %vm452, %v1059, %v1061
      %v1075 = vsel %vm452, %v1061, %v1063
      %v1076 = vsel %vm452, %v1063, %v1065
      %v1077 = vsel %vm452, %v1065, %v1067
      %v1078 = vsel %vm452, %v1067, %v1069
      %v1079 = vsel %vm452, %v1069, %v1071
      %v1080 = vsel %vm452, %v1071, %v1073
      %v1082 = vsel %vm452, 0.0, %v1059
      %1083 = vrot.lane.b32.xlu0 %v1001, 31
      %v1084 = vpop.permute.xlu0 %1083
      %1085 = vrot.lane.b32.xlu0 %v1002, 31
      %v1086 = vpop.permute.xlu0 %1085
      %1087 = vrot.lane.b32.xlu0 %v1003, 31
      %v1088 = vpop.permute.xlu0 %1087
      %1089 = vrot.lane.b32.xlu0 %v1004, 31
      %v1090 = vpop.permute.xlu0 %1089
      %1091 = vrot.lane.b32.xlu0 %v1005, 31
      %v1092 = vpop.permute.xlu0 %1091
      %1093 = vrot.lane.b32.xlu0 %v1006, 31
      %v1094 = vpop.permute.xlu0 %1093
      %1095 = vrot.lane.b32.xlu0 %v1007, 31
      %v1096 = vpop.permute.xlu0 %1095
      %1097 = vrot.lane.b32.xlu0 %v1008, 31
      %v1098 = vpop.permute.xlu0 %1097
      %v1099 = vsel %vm485, %v1084, %v1086
      %v1100 = vsel %vm485, %v1086, %v1088
      %v1101 = vsel %vm485, %v1088, %v1090
      %v1102 = vsel %vm485, %v1090, %v1092
      %v1103 = vsel %vm485, %v1092, %v1094
      %v1104 = vsel %vm485, %v1094, %v1096
      %v1105 = vsel %vm485, %v1096, %v1098
      %v1114 = vsel %vm485, 0.0, %v1084
      %v1115 = vmul.f32 %v1114, %v370
      %v1116 = vmul.f32 %v1099, %v371
      %v1117 = vmul.f32 %v1100, %v372
      %v1118 = vmul.f32 %v1101, %v373
      %v1119 = vmul.f32 %v1102, %v374
      %v1120 = vmul.f32 %v1103, %v375
      %v1121 = vmul.f32 %v1104, %v376
      %v1122 = vmul.f32 %v1105, %v377
      %1123 = vrot.lane.b32.xlu0 %v1001, 1
      %v1124 = vpop.permute.xlu0 %1123
      %1125 = vrot.lane.b32.xlu0 %v1002, 1
      %v1126 = vpop.permute.xlu0 %1125
      %1127 = vrot.lane.b32.xlu0 %v1003, 1
      %v1128 = vpop.permute.xlu0 %1127
      %1129 = vrot.lane.b32.xlu0 %v1004, 1
      %v1130 = vpop.permute.xlu0 %1129
      %1131 = vrot.lane.b32.xlu0 %v1005, 1
      %v1132 = vpop.permute.xlu0 %1131
      %1133 = vrot.lane.b32.xlu0 %v1006, 1
      %v1134 = vpop.permute.xlu0 %1133
      %1135 = vrot.lane.b32.xlu0 %v1007, 1
      %v1136 = vpop.permute.xlu0 %1135
      %1137 = vrot.lane.b32.xlu0 %v1008, 1
      %v1138 = vpop.permute.xlu0 %1137
      %v1139 = vsel %vm526, %v1124, %v1126
      %v1140 = vsel %vm526, %v1126, %v1128
      %v1141 = vsel %vm526, %v1128, %v1130
      %v1142 = vsel %vm526, %v1130, %v1132
      %v1143 = vsel %vm526, %v1132, %v1134
      %v1144 = vsel %vm526, %v1134, %v1136
      %v1145 = vsel %vm526, %v1136, %v1138
      %v1154 = vsel %vm526, 0.0, %v1124
      %v1155 = vmul.f32 %v1154, %v346
      %v1156 = vmul.f32 %v1139, %v347
      %v1157 = vmul.f32 %v1140, %v348
      %v1158 = vmul.f32 %v1141, %v349
      %v1159 = vmul.f32 %v1142, %v350
      %v1160 = vmul.f32 %v1143, %v351
      %v1161 = vmul.f32 %v1144, %v352
      %v1162 = vmul.f32 %v1145, %v353
      %1163 = vrot.lane.b32.xlu0 %v1001, 127
      %v1164 = vpop.permute.xlu0 %1163
      %1165 = vrot.lane.b32.xlu0 %v1002, 127
      %v1166 = vpop.permute.xlu0 %1165
      %1167 = vrot.lane.b32.xlu0 %v1003, 127
      %v1168 = vpop.permute.xlu0 %1167
      %1169 = vrot.lane.b32.xlu0 %v1004, 127
      %v1170 = vpop.permute.xlu0 %1169
      %1171 = vrot.lane.b32.xlu0 %v1005, 127
      %v1172 = vpop.permute.xlu0 %1171
      %1173 = vrot.lane.b32.xlu0 %v1006, 127
      %v1174 = vpop.permute.xlu0 %1173
      %1175 = vrot.lane.b32.xlu0 %v1007, 127
      %v1176 = vpop.permute.xlu0 %1175
      %1177 = vrot.lane.b32.xlu0 %v1008, 127
      %v1178 = vpop.permute.xlu0 %1177
      %v1179 = vsel %vm567, %v1164, %v1166
      %v1180 = vsel %vm567, %v1166, %v1168
      %v1181 = vsel %vm567, %v1168, %v1170
      %v1182 = vsel %vm567, %v1170, %v1172
      %v1183 = vsel %vm567, %v1172, %v1174
      %v1184 = vsel %vm567, %v1174, %v1176
      %v1185 = vsel %vm567, %v1176, %v1178
      %v1194 = vsel %vm567, %v1178, 0.0
      %v1195 = vmul.f32 %v1179, %v370
      %v1196 = vmul.f32 %v1180, %v371
      %v1197 = vmul.f32 %v1181, %v372
      %v1198 = vmul.f32 %v1182, %v373
      %v1199 = vmul.f32 %v1183, %v374
      %v1200 = vmul.f32 %v1184, %v375
      %v1201 = vmul.f32 %v1185, %v376
      %v1202 = vmul.f32 %v1194, %v377
      %1203 = vrot.lane.b32.xlu0 %v1001, 97
      %v1204 = vpop.permute.xlu0 %1203
      %1205 = vrot.lane.b32.xlu0 %v1002, 97
      %v1206 = vpop.permute.xlu0 %1205
      %1207 = vrot.lane.b32.xlu0 %v1003, 97
      %v1208 = vpop.permute.xlu0 %1207
      %1209 = vrot.lane.b32.xlu0 %v1004, 97
      %v1210 = vpop.permute.xlu0 %1209
      %1211 = vrot.lane.b32.xlu0 %v1005, 97
      %v1212 = vpop.permute.xlu0 %1211
      %1213 = vrot.lane.b32.xlu0 %v1006, 97
      %v1214 = vpop.permute.xlu0 %1213
      %1215 = vrot.lane.b32.xlu0 %v1007, 97
      %v1216 = vpop.permute.xlu0 %1215
      %1217 = vrot.lane.b32.xlu0 %v1008, 97
      %v1218 = vpop.permute.xlu0 %1217
      %v1219 = vsel %vm608, %v1204, %v1206
      %v1220 = vsel %vm608, %v1206, %v1208
      %v1221 = vsel %vm608, %v1208, %v1210
      %v1222 = vsel %vm608, %v1210, %v1212
      %v1223 = vsel %vm608, %v1212, %v1214
      %v1224 = vsel %vm608, %v1214, %v1216
      %v1225 = vsel %vm608, %v1216, %v1218
      %v1234 = vsel %vm608, %v1218, 0.0
      %v1235 = vmul.f32 %v1219, %v346
      %v1236 = vmul.f32 %v1220, %v347
      %v1237 = vmul.f32 %v1221, %v348
      %v1238 = vmul.f32 %v1222, %v349
      %v1239 = vmul.f32 %v1223, %v350
      %v1240 = vmul.f32 %v1224, %v351
      %v1241 = vmul.f32 %v1225, %v352
      %v1242 = vmul.f32 %v1234, %v353
      %1243 = vrot.lane.b32.xlu0 %v1001, 96
      %v1244 = vpop.permute.xlu0 %1243
      %1245 = vrot.lane.b32.xlu0 %v1002, 96
      %v1246 = vpop.permute.xlu0 %1245
      %1247 = vrot.lane.b32.xlu0 %v1003, 96
      %v1248 = vpop.permute.xlu0 %1247
      %1249 = vrot.lane.b32.xlu0 %v1004, 96
      %v1250 = vpop.permute.xlu0 %1249
      %1251 = vrot.lane.b32.xlu0 %v1005, 96
      %v1252 = vpop.permute.xlu0 %1251
      %1253 = vrot.lane.b32.xlu0 %v1006, 96
      %v1254 = vpop.permute.xlu0 %1253
      %1255 = vrot.lane.b32.xlu0 %v1007, 96
      %v1256 = vpop.permute.xlu0 %1255
      %1257 = vrot.lane.b32.xlu0 %v1008, 96
      %v1258 = vpop.permute.xlu0 %1257
      %v1259 = vsel %vm649, %v1244, %v1246
      %v1260 = vsel %vm649, %v1246, %v1248
      %v1261 = vsel %vm649, %v1248, %v1250
      %v1262 = vsel %vm649, %v1250, %v1252
      %v1263 = vsel %vm649, %v1252, %v1254
      %v1264 = vsel %vm649, %v1254, %v1256
      %v1265 = vsel %vm649, %v1256, %v1258
      %v1267 = vsel %vm649, %v1258, 0.0
      %1268 = vrot.lane.b32.xlu0 %v1001, 95
      %v1269 = vpop.permute.xlu0 %1268
      %1270 = vrot.lane.b32.xlu0 %v1002, 95
      %v1271 = vpop.permute.xlu0 %1270
      %1272 = vrot.lane.b32.xlu0 %v1003, 95
      %v1273 = vpop.permute.xlu0 %1272
      %1274 = vrot.lane.b32.xlu0 %v1004, 95
      %v1275 = vpop.permute.xlu0 %1274
      %1276 = vrot.lane.b32.xlu0 %v1005, 95
      %v1277 = vpop.permute.xlu0 %1276
      %1278 = vrot.lane.b32.xlu0 %v1006, 95
      %v1279 = vpop.permute.xlu0 %1278
      %1280 = vrot.lane.b32.xlu0 %v1007, 95
      %v1281 = vpop.permute.xlu0 %1280
      %1282 = vrot.lane.b32.xlu0 %v1008, 95
      %v1283 = vpop.permute.xlu0 %1282
      %v1284 = vsel %vm682, %v1269, %v1271
      %v1285 = vsel %vm682, %v1271, %v1273
      %v1286 = vsel %vm682, %v1273, %v1275
      %v1287 = vsel %vm682, %v1275, %v1277
      %v1288 = vsel %vm682, %v1277, %v1279
      %v1289 = vsel %vm682, %v1279, %v1281
      %v1290 = vsel %vm682, %v1281, %v1283
      %v1299 = vsel %vm682, %v1283, 0.0
      %v1300 = vmul.f32 %v1284, %v370
      %v1301 = vmul.f32 %v1285, %v371
      %v1302 = vmul.f32 %v1286, %v372
      %v1303 = vmul.f32 %v1287, %v373
      %v1304 = vmul.f32 %v1288, %v374
      %v1305 = vmul.f32 %v1289, %v375
      %v1306 = vmul.f32 %v1290, %v376
      %v1307 = vmul.f32 %v1299, %v377
      %v1309 = vrot.slane %v1082, 4
      %v1310 = vrot.slane %v1074, 4
      %v1311 = vrot.slane %v1075, 4
      %v1312 = vrot.slane %v1076, 4
      %v1313 = vrot.slane %v1077, 4
      %v1314 = vrot.slane %v1078, 4
      %v1315 = vrot.slane %v1079, 4
      %v1316 = vrot.slane %v1080, 4
      %v1333 = vrot.slane %v1155, 4
      %v1334 = vrot.slane %v1156, 4
      %v1335 = vrot.slane %v1157, 4
      %v1336 = vrot.slane %v1158, 4
      %v1337 = vrot.slane %v1159, 4
      %v1338 = vrot.slane %v1160, 4
      %v1339 = vrot.slane %v1161, 4
      %v1340 = vrot.slane %v1162, 4
      %v1357 = vrot.slane %v1195, 4
      %v1358 = vrot.slane %v1196, 4
      %v1359 = vrot.slane %v1197, 4
      %v1360 = vrot.slane %v1198, 4
      %v1361 = vrot.slane %v1199, 4
      %v1362 = vrot.slane %v1200, 4
      %v1363 = vrot.slane %v1201, 4
      %v1364 = vrot.slane %v1202, 4
      %v1374 = vrot.slane %v1259, 4
      %v1375 = vrot.slane %v1260, 4
      %v1376 = vrot.slane %v1261, 4
      %v1377 = vrot.slane %v1262, 4
      %v1378 = vrot.slane %v1263, 4
      %v1379 = vrot.slane %v1264, 4
      %v1380 = vrot.slane %v1265, 4
      %v1381 = vrot.slane %v1267, 4
      %vm1390 = vcmask 1043456
      %v1391 = vsel %vm1390, %v1050, %v1309
      %v1392 = vsel %vm1390, %v1051, %v1310
      %v1393 = vsel %vm1390, %v1052, %v1311
      %v1394 = vsel %vm1390, %v1053, %v1312
      %v1395 = vsel %vm1390, %v1054, %v1313
      %v1396 = vsel %vm1390, %v1055, %v1314
      %v1397 = vsel %vm1390, %v1056, %v1315
      %v1398 = vsel %vm1390, %v1057, %v1316
      %v1399 = vsel %vm1390, %v1115, %v1333
      %v1400 = vsel %vm1390, %v1116, %v1334
      %v1401 = vsel %vm1390, %v1117, %v1335
      %v1402 = vsel %vm1390, %v1118, %v1336
      %v1403 = vsel %vm1390, %v1119, %v1337
      %v1404 = vsel %vm1390, %v1120, %v1338
      %v1405 = vsel %vm1390, %v1121, %v1339
      %v1406 = vsel %vm1390, %v1122, %v1340
      %v1407 = vsel %vm1390, %v1001, %v1357
      %v1408 = vsel %vm1390, %v1002, %v1358
      %v1409 = vsel %vm1390, %v1003, %v1359
      %v1410 = vsel %vm1390, %v1004, %v1360
      %v1411 = vsel %vm1390, %v1005, %v1361
      %v1412 = vsel %vm1390, %v1006, %v1362
      %v1413 = vsel %vm1390, %v1007, %v1363
      %v1414 = vsel %vm1390, %v1008, %v1364
      %v1415 = vsel %vm1390, %v1235, %v1374
      %v1416 = vsel %vm1390, %v1236, %v1375
      %v1417 = vsel %vm1390, %v1237, %v1376
      %v1418 = vsel %vm1390, %v1238, %v1377
      %v1419 = vsel %vm1390, %v1239, %v1378
      %v1420 = vsel %vm1390, %v1240, %v1379
      %v1421 = vsel %vm1390, %v1241, %v1380
      %v1422 = vsel %vm1390, %v1242, %v1381
      %v1423 = vld [vmem:[%s4] sm:$0xff]
      %1425 = vset.pattern.permute.xlu0 0
      %1426 = vperm.xlu0 %1425, %v1423
      %v1427 = vpop.permute.xlu0 %1426
      %vm1429 = vcmask 293888
      %v1431 = vsel %vm1429, %v1009, 0
      %v1434 = vsel %vm1390, %v1300, 0
      %v1437 = vsel %vm1390, %v1301, 0
      %v1440 = vsel %vm1390, %v1302, 0
      %v1443 = vsel %vm1390, %v1303, 0
      %v1446 = vsel %vm1390, %v1304, 0
      %v1449 = vsel %vm1390, %v1305, 0
      %v1452 = vsel %vm1390, %v1306, 0
      %v1455 = vsel %vm1390, %v1307, 0
      %1457 = vmatprep.subr.mxu0 0.0
      %1458 = vmatpush1.msra.mxu0 0.0
      %1459 = vmatprep.subr.mxu0 0.0
      %1460 = vmatpush1.msra.mxu0 0.0
      %1461 = vmatprep.subr.mxu0 0.0
      %1462 = vmatpush1.msra.mxu0 0.0
      %1463 = vmatprep.subr.mxu0 0.0
      %1464 = vmatpush1.msra.mxu0 0.0
      %1465 = vmatprep.subr.mxu0 0.0
      %1466 = vmatpush1.msra.mxu0 0.0
      %1467 = vmatprep.subr.mxu0 0.0
      %1468 = vmatpush1.msra.mxu0 0.0
      %1469 = vmatprep.subr.mxu0 0.0
      %1470 = vmatpush1.msra.mxu0 0.0
      %1471 = vmatprep.subr.mxu0 0.0
      %1472 = vmatpush1.msra.mxu0 0.0
      %1473 = vmatprep.subr.mxu0 0.0
      %1474 = vmatpush1.msra.mxu0 0.0
      %1475 = vmatprep.subr.mxu0 0.0
      %1476 = vmatpush1.msra.mxu0 0.0
      %1477 = vmatprep.subr.mxu0 0.0
      %1478 = vmatpush1.msra.mxu0 0.0
      %1479 = vmatprep.subr.mxu0 %v1437
      %1480 = vmatpush1.msra.mxu0 %v1434
      %1481 = vmatprep.subr.mxu0 %v1416
      %1482 = vmatpush1.msra.mxu0 %v1415
      %1483 = vmatprep.subr.mxu0 %v1408
      %1484 = vmatpush1.msra.mxu0 %v1407
      %1485 = vmatprep.subr.mxu0 %v1400
      %1486 = vmatpush1.msra.mxu0 %v1399
      %1487 = vmatprep.subr.mxu0 %v1392
      %1488 = vmatpush1.msra.mxu0 %v1391
      %1489 = vmatprep.subr.mxu0 0.0
      %1490 = vmatpush2.msra.mxu0 0.0
      %1491 = vmatprep.subr.mxu0 0.0
      %1492 = vmatpush2.msra.mxu0 0.0
      %1493 = vmatprep.subr.mxu0 0.0
      %1494 = vmatpush2.msra.mxu0 0.0
      %1495 = vmatprep.subr.mxu0 0.0
      %1496 = vmatpush2.msra.mxu0 0.0
      %1497 = vmatprep.subr.mxu0 0.0
      %1498 = vmatpush2.msra.mxu0 0.0
      %1499 = vmatprep.subr.mxu0 0.0
      %1500 = vmatpush2.msra.mxu0 0.0
      %1501 = vmatprep.subr.mxu0 0.0
      %1502 = vmatpush2.msra.mxu0 0.0
      %1503 = vmatprep.subr.mxu0 0.0
      %1504 = vmatpush2.msra.mxu0 0.0
      %1505 = vmatprep.subr.mxu0 0.0
      %1506 = vmatpush2.msra.mxu0 0.0
      %1507 = vmatprep.subr.mxu0 0.0
      %1508 = vmatpush2.msra.mxu0 0.0
      %1509 = vmatprep.subr.mxu0 0.0
      %1510 = vmatpush2.msra.mxu0 0.0
      %1511 = vmatprep.subr.mxu0 0.0
      %1512 = vmatpush2.msra.mxu0 0.0
      %1513 = vmatprep.subr.mxu0 0.0
      %1514 = vmatpush2.msra.mxu0 0.0
      %1515 = vmatprep.subr.mxu0 0.0
      %1516 = vmatpush2.msra.mxu0 0.0
      %1517 = vmatprep.subr.mxu0 0.0
      %1518 = vmatpush2.msra.mxu0 0.0
      %1519 = vmatprep.subr.mxu0 0.0
      %1520 = vmatpush2.msra.mxu0 0.0
      %1521 = vmatprep.mubr.f32.mxu0 0.0
      %1522 = vmatmul.mubr.f32.gmra.mxu0 %v1431
      %v1523 = vpop.f32.mrf.mxu0
      %v1524 = vadd.f32 %v1427, %v1523
      %v1525 = vpop.f32.mrf.mxu0
      %v1526 = vadd.f32 %v1427, %v1525
      %1527 = vdwg.mxu0
      %1528 = vmatprep.subr.mxu0 0.0
      %1529 = vmatpush1.msra.mxu0 0.0
      %1530 = vmatprep.subr.mxu0 0.0
      %1531 = vmatpush1.msra.mxu0 0.0
      %1532 = vmatprep.subr.mxu0 0.0
      %1533 = vmatpush1.msra.mxu0 0.0
      %1534 = vmatprep.subr.mxu0 0.0
      %1535 = vmatpush1.msra.mxu0 0.0
      %1536 = vmatprep.subr.mxu0 0.0
      %1537 = vmatpush1.msra.mxu0 0.0
      %1538 = vmatprep.subr.mxu0 0.0
      %1539 = vmatpush1.msra.mxu0 0.0
      %1540 = vmatprep.subr.mxu0 0.0
      %1541 = vmatpush1.msra.mxu0 0.0
      %1542 = vmatprep.subr.mxu0 0.0
      %1543 = vmatpush1.msra.mxu0 0.0
      %1544 = vmatprep.subr.mxu0 0.0
      %1545 = vmatpush1.msra.mxu0 0.0
      %1546 = vmatprep.subr.mxu0 0.0
      %1547 = vmatpush1.msra.mxu0 0.0
      %1548 = vmatprep.subr.mxu0 0.0
      %1549 = vmatpush1.msra.mxu0 0.0
      %1550 = vmatprep.subr.mxu0 %v1443
      %1551 = vmatpush1.msra.mxu0 %v1440
      %1552 = vmatprep.subr.mxu0 %v1418
      %1553 = vmatpush1.msra.mxu0 %v1417
      %1554 = vmatprep.subr.mxu0 %v1410
      %1555 = vmatpush1.msra.mxu0 %v1409
      %1556 = vmatprep.subr.mxu0 %v1402
      %1557 = vmatpush1.msra.mxu0 %v1401
      %1558 = vmatprep.subr.mxu0 %v1394
      %1559 = vmatpush1.msra.mxu0 %v1393
      %1560 = vmatprep.subr.mxu0 0.0
      %1561 = vmatpush2.msra.mxu0 0.0
      %1562 = vmatprep.subr.mxu0 0.0
      %1563 = vmatpush2.msra.mxu0 0.0
      %1564 = vmatprep.subr.mxu0 0.0
      %1565 = vmatpush2.msra.mxu0 0.0
      %1566 = vmatprep.subr.mxu0 0.0
      %1567 = vmatpush2.msra.mxu0 0.0
      %1568 = vmatprep.subr.mxu0 0.0
      %1569 = vmatpush2.msra.mxu0 0.0
      %1570 = vmatprep.subr.mxu0 0.0
      %1571 = vmatpush2.msra.mxu0 0.0
      %1572 = vmatprep.subr.mxu0 0.0
      %1573 = vmatpush2.msra.mxu0 0.0
      %1574 = vmatprep.subr.mxu0 0.0
      %1575 = vmatpush2.msra.mxu0 0.0
      %1576 = vmatprep.subr.mxu0 0.0
      %1577 = vmatpush2.msra.mxu0 0.0
      %1578 = vmatprep.subr.mxu0 0.0
      %1579 = vmatpush2.msra.mxu0 0.0
      %1580 = vmatprep.subr.mxu0 0.0
      %1581 = vmatpush2.msra.mxu0 0.0
      %1582 = vmatprep.subr.mxu0 0.0
      %1583 = vmatpush2.msra.mxu0 0.0
      %1584 = vmatprep.subr.mxu0 0.0
      %1585 = vmatpush2.msra.mxu0 0.0
      %1586 = vmatprep.subr.mxu0 0.0
      %1587 = vmatpush2.msra.mxu0 0.0
      %1588 = vmatprep.subr.mxu0 0.0
      %1589 = vmatpush2.msra.mxu0 0.0
      %1590 = vmatprep.subr.mxu0 0.0
      %1591 = vmatpush2.msra.mxu0 0.0
      %1592 = vmatprep.mubr.f32.mxu0 0.0
      %1593 = vmatmul.mubr.f32.gmra.mxu0 %v1431
      %v1594 = vpop.f32.mrf.mxu0
      %v1595 = vadd.f32 %v1427, %v1594
      %v1596 = vpop.f32.mrf.mxu0
      %v1597 = vadd.f32 %v1427, %v1596
      %1598 = vdwg.mxu0
      %1599 = vmatprep.subr.mxu0 0.0
      %1600 = vmatpush1.msra.mxu0 0.0
      %1601 = vmatprep.subr.mxu0 0.0
      %1602 = vmatpush1.msra.mxu0 0.0
      %1603 = vmatprep.subr.mxu0 0.0
      %1604 = vmatpush1.msra.mxu0 0.0
      %1605 = vmatprep.subr.mxu0 0.0
      %1606 = vmatpush1.msra.mxu0 0.0
      %1607 = vmatprep.subr.mxu0 0.0
      %1608 = vmatpush1.msra.mxu0 0.0
      %1609 = vmatprep.subr.mxu0 0.0
      %1610 = vmatpush1.msra.mxu0 0.0
      %1611 = vmatprep.subr.mxu0 0.0
      %1612 = vmatpush1.msra.mxu0 0.0
      %1613 = vmatprep.subr.mxu0 0.0
      %1614 = vmatpush1.msra.mxu0 0.0
      %1615 = vmatprep.subr.mxu0 0.0
      %1616 = vmatpush1.msra.mxu0 0.0
      %1617 = vmatprep.subr.mxu0 0.0
      %1618 = vmatpush1.msra.mxu0 0.0
      %1619 = vmatprep.subr.mxu0 0.0
      %1620 = vmatpush1.msra.mxu0 0.0
      %1621 = vmatprep.subr.mxu0 %v1449
      %1622 = vmatpush1.msra.mxu0 %v1446
      %1623 = vmatprep.subr.mxu0 %v1420
      %1624 = vmatpush1.msra.mxu0 %v1419
      %1625 = vmatprep.subr.mxu0 %v1412
      %1626 = vmatpush1.msra.mxu0 %v1411
      %1627 = vmatprep.subr.mxu0 %v1404
      %1628 = vmatpush1.msra.mxu0 %v1403
      %1629 = vmatprep.subr.mxu0 %v1396
      %1630 = vmatpush1.msra.mxu0 %v1395
      %1631 = vmatprep.subr.mxu0 0.0
      %1632 = vmatpush2.msra.mxu0 0.0
      %1633 = vmatprep.subr.mxu0 0.0
      %1634 = vmatpush2.msra.mxu0 0.0
      %1635 = vmatprep.subr.mxu0 0.0
      %1636 = vmatpush2.msra.mxu0 0.0
      %1637 = vmatprep.subr.mxu0 0.0
      %1638 = vmatpush2.msra.mxu0 0.0
      %1639 = vmatprep.subr.mxu0 0.0
      %1640 = vmatpush2.msra.mxu0 0.0
      %1641 = vmatprep.subr.mxu0 0.0
      %1642 = vmatpush2.msra.mxu0 0.0
      %1643 = vmatprep.subr.mxu0 0.0
      %1644 = vmatpush2.msra.mxu0 0.0
      %1645 = vmatprep.subr.mxu0 0.0
      %1646 = vmatpush2.msra.mxu0 0.0
      %1647 = vmatprep.subr.mxu0 0.0
      %1648 = vmatpush2.msra.mxu0 0.0
      %1649 = vmatprep.subr.mxu0 0.0
      %1650 = vmatpush2.msra.mxu0 0.0
      %1651 = vmatprep.subr.mxu0 0.0
      %1652 = vmatpush2.msra.mxu0 0.0
      %1653 = vmatprep.subr.mxu0 0.0
      %1654 = vmatpush2.msra.mxu0 0.0
      %1655 = vmatprep.subr.mxu0 0.0
      %1656 = vmatpush2.msra.mxu0 0.0
      %1657 = vmatprep.subr.mxu0 0.0
      %1658 = vmatpush2.msra.mxu0 0.0
      %1659 = vmatprep.subr.mxu0 0.0
      %1660 = vmatpush2.msra.mxu0 0.0
      %1661 = vmatprep.subr.mxu0 0.0
      %1662 = vmatpush2.msra.mxu0 0.0
      %1663 = vmatprep.mubr.f32.mxu0 0.0
      %1664 = vmatmul.mubr.f32.gmra.mxu0 %v1431
      %v1665 = vpop.f32.mrf.mxu0
      %v1666 = vadd.f32 %v1427, %v1665
      %v1667 = vpop.f32.mrf.mxu0
      %v1668 = vadd.f32 %v1427, %v1667
      %1669 = vdwg.mxu0
      %1670 = vmatprep.subr.mxu0 0.0
      %1671 = vmatpush1.msra.mxu0 0.0
      %1672 = vmatprep.subr.mxu0 0.0
      %1673 = vmatpush1.msra.mxu0 0.0
      %1674 = vmatprep.subr.mxu0 0.0
      %1675 = vmatpush1.msra.mxu0 0.0
      %1676 = vmatprep.subr.mxu0 0.0
      %1677 = vmatpush1.msra.mxu0 0.0
      %1678 = vmatprep.subr.mxu0 0.0
      %1679 = vmatpush1.msra.mxu0 0.0
      %1680 = vmatprep.subr.mxu0 0.0
      %1681 = vmatpush1.msra.mxu0 0.0
      %1682 = vmatprep.subr.mxu0 0.0
      %1683 = vmatpush1.msra.mxu0 0.0
      %1684 = vmatprep.subr.mxu0 0.0
      %1685 = vmatpush1.msra.mxu0 0.0
      %1686 = vmatprep.subr.mxu0 0.0
      %1687 = vmatpush1.msra.mxu0 0.0
      %1688 = vmatprep.subr.mxu0 0.0
      %1689 = vmatpush1.msra.mxu0 0.0
      %1690 = vmatprep.subr.mxu0 0.0
      %1691 = vmatpush1.msra.mxu0 0.0
      %1692 = vmatprep.subr.mxu0 %v1455
      %1693 = vmatpush1.msra.mxu0 %v1452
      %1694 = vmatprep.subr.mxu0 %v1422
      %1695 = vmatpush1.msra.mxu0 %v1421
      %1696 = vmatprep.subr.mxu0 %v1414
      %1697 = vmatpush1.msra.mxu0 %v1413
      %1698 = vmatprep.subr.mxu0 %v1406
      %1699 = vmatpush1.msra.mxu0 %v1405
      %1700 = vmatprep.subr.mxu0 %v1398
      %1701 = vmatpush1.msra.mxu0 %v1397
      %1702 = vmatprep.subr.mxu0 0.0
      %1703 = vmatpush2.msra.mxu0 0.0
      %1704 = vmatprep.subr.mxu0 0.0
      %1705 = vmatpush2.msra.mxu0 0.0
      %1706 = vmatprep.subr.mxu0 0.0
      %1707 = vmatpush2.msra.mxu0 0.0
      %1708 = vmatprep.subr.mxu0 0.0
      %1709 = vmatpush2.msra.mxu0 0.0
      %1710 = vmatprep.subr.mxu0 0.0
      %1711 = vmatpush2.msra.mxu0 0.0
      %1712 = vmatprep.subr.mxu0 0.0
      %1713 = vmatpush2.msra.mxu0 0.0
      %1714 = vmatprep.subr.mxu0 0.0
      %1715 = vmatpush2.msra.mxu0 0.0
      %1716 = vmatprep.subr.mxu0 0.0
      %1717 = vmatpush2.msra.mxu0 0.0
      %1718 = vmatprep.subr.mxu0 0.0
      %1719 = vmatpush2.msra.mxu0 0.0
      %1720 = vmatprep.subr.mxu0 0.0
      %1721 = vmatpush2.msra.mxu0 0.0
      %1722 = vmatprep.subr.mxu0 0.0
      %1723 = vmatpush2.msra.mxu0 0.0
      %1724 = vmatprep.subr.mxu0 0.0
      %1725 = vmatpush2.msra.mxu0 0.0
      %1726 = vmatprep.subr.mxu0 0.0
      %1727 = vmatpush2.msra.mxu0 0.0
      %1728 = vmatprep.subr.mxu0 0.0
      %1729 = vmatpush2.msra.mxu0 0.0
      %1730 = vmatprep.subr.mxu0 0.0
      %1731 = vmatpush2.msra.mxu0 0.0
      %1732 = vmatprep.subr.mxu0 0.0
      %1733 = vmatpush2.msra.mxu0 0.0
      %1734 = vmatprep.mubr.f32.mxu0 0.0
      %1735 = vmatmul.mubr.f32.gmra.mxu0 %v1431
      %v1736 = vpop.f32.mrf.mxu0
      %v1737 = vadd.f32 %v1427, %v1736
      %v1738 = vpop.f32.mrf.mxu0
      %v1739 = vadd.f32 %v1427, %v1738
      %1740 = vdwg.mxu0
      %v1741 = vmax.f32 %v1524, 0.0
      %v1742 = vmax.f32 %v1526, 0.0
      %v1743 = vmax.f32 %v1595, 0.0
      %v1744 = vmax.f32 %v1597, 0.0
      %v1745 = vmax.f32 %v1666, 0.0
      %v1746 = vmax.f32 %v1668, 0.0
      %v1747 = vmax.f32 %v1737, 0.0
      %v1748 = vmax.f32 %v1739, 0.0
      %1749 = vst [vmem:[%s224] sm:$0xff] %v1741
      %1750 = vst [vmem:[%s224 + $0x8] sm:$0xff] %v1742
      %1751 = vst [vmem:[%s224 + $0x10] sm:$0xff] %v1743
      %1752 = vst [vmem:[%s224 + $0x18] sm:$0xff] %v1744
      %1753 = vst [vmem:[%s224 + $0x20] sm:$0xff] %v1745
      %1754 = vst [vmem:[%s224 + $0x28] sm:$0xff] %v1746
      %1755 = vst [vmem:[%s224 + $0x30] sm:$0xff] %v1747
      %1756 = vst [vmem:[%s224 + $0x38] sm:$0xff] %v1748
      %p1757 = scmp.lt.s32.totalorder %s16, 1
      %s1758 = scalar_select %p1757, %s16, 1
      %s1759 = smul.addr %s1758, 8
      %s1760 = smul.addr %s1759, 8
      %s1761 = scalar_lea.vmem %s5, %s1760
      // Predicated region
      $region41: #{up_2_skip_forward.1} parent=39 // pred_check
        %p1762 = pneg %p144
      $region42: #{up_2_skip_forward.1} parent=39 // pred_check_branch
        %1764 = sbr.rel (%p1762) target = $region44
      $region43: #{up_2_skip_forward.1} parent=39 // pred_region
        _
      $region44: #{up_2_skip_forward.1} parent=39 // pred_fallthru
        _
    $region40: #{up_2_skip_forward.1} parent=5 // pred_fallthru
      _
    %p1765 = scmp.le.s32.totalorder 2, %s11
    // Predicated region
    $region45: #{up_2_skip_forward.1} parent=5 // pred_check
      %p1766 = pneg %p1765
    $region46: #{up_2_skip_forward.1} parent=5 // pred_check_branch
      %1768 = sbr.rel (%p1766) target = $region48
    $region47: #{up_2_skip_forward.1} parent=5 // pred_region
      %s1769 = ssub.s32 %s11, 2
      // Predicated region
      $region49: #{up_2_skip_forward.1} parent=47 // pred_check
        %p1770 = pneg %p150
      $region50: #{up_2_skip_forward.1} parent=47 // pred_check_branch
        %1772 = sbr.rel (%p1770) target = $region52
      $region51: #{up_2_skip_forward.1} parent=47 // pred_region
        %p1773 = scmp.lt.s32.totalorder %s17, 1
        %s1774 = scalar_select %p1773, %s17, 1
        %s1775 = smul.addr %s1774, 8
        %s1776 = smul.addr %s1775, 8
        %s1777 = scalar_lea.vmem %s5, %s1776
      $region52: #{up_2_skip_forward.1} parent=47 // pred_fallthru
        _
    $region48: #{up_2_skip_forward.1} parent=5 // pred_fallthru
      _
  $region6: #{up_2_skip_forward.1} parent=0 // loop_footer
    %s15 = sadd.s32 1, %s11
  $region7: #{up_2_skip_forward.1} parent=0 // loop_footer_branch
    %10 = sbr.rel target = $region3
  $region8: #{up_2_skip_forward.1} parent=0 // loop_exit
    _

</llo_original>
